<compile_context>
chip_gen: v5e
topology: v5e:2x2
jax: 0.10.0
libtpu: 0.0.40
codegen_flags: <defaults>
</compile_context>

<pallas_src>
import functools

import jax
import jax.numpy as jnp
import numpy as np
from jax.experimental import pallas as pl
from jax.experimental.pallas import tpu as pltpu


def _emsa_kernel(*refs, n_heads, dim_k, dim_v, bblk, fuse_ln):
    if fuse_ln:
        (x_q_ref, x_kv_ref, wq_ref, wk_ref, wv_ref, wp_ref, bp_ref,
         ln_g_ref, ln_b_ref, out_ref, k_all_ref, v_all_ref) = refs
    else:
        (x_q_ref, x_kv_ref, wq_ref, wk_ref, wv_ref, wp_ref, bp_ref,
         out_ref, k_all_ref, v_all_ref) = refs
        ln_g_ref = ln_b_ref = None

    _, tq, d_model = x_q_ref.shape
    _, nkv, _ = x_kv_ref.shape
    mq = bblk * tq
    mkv = bblk * nkv

    # ---- K/V projection cache: fill once per batch block (query-tile index 0).
    #      x_kv's block index is constant in qi, so the data stays resident; this
    #      avoids redoing LN + K/V projections for every query tile.
    @pl.when(pl.program_id(1) == 0)
    def _fill_kv_cache():
        xkv = x_kv_ref[...].reshape(mkv, d_model)
        if fuse_ln:
            # LayerNorm of the spatially-reduced kv tokens, fused (f32 math).
            mu = jnp.mean(xkv, axis=-1, keepdims=True)
            var = jnp.mean(jnp.square(xkv - mu), axis=-1, keepdims=True)
            xkv = (xkv - mu) * jax.lax.rsqrt(var + 1e-5)
            xkv = xkv * ln_g_ref[...] + ln_b_ref[...]
        xkv = xkv.astype(jnp.bfloat16)
        # Lane-dense projections: N = H*dk / H*dv (fills the MXU output width).
        k_all_ref[...] = jnp.dot(
            xkv, wk_ref[...], preferred_element_type=jnp.float32).astype(jnp.bfloat16)
        v_all_ref[...] = jnp.dot(
            xkv, wv_ref[...], preferred_element_type=jnp.float32).astype(jnp.bfloat16)

    # ---- Q projection (lane-dense, scale already folded into Wq host-side).
    xq = x_q_ref[...].reshape(mq, d_model).astype(jnp.bfloat16)
    q_all = jnp.dot(xq, wq_ref[...],
                    preferred_element_type=jnp.float32).astype(jnp.bfloat16)  # (mq, H*dk)

    # ---- Attention per (batch, head); per-batch lane-dense concat of head outputs.
    o_rows = []
    for b in range(bblk):           # attention must not mix batch elements
        k_b = k_all_ref[b * nkv:(b + 1) * nkv, :]   # (nkv, H*dk) bf16
        v_b = v_all_ref[b * nkv:(b + 1) * nkv, :]   # (nkv, H*dv) bf16
        oh_list = []
        for h in range(n_heads):
            qh = q_all[b * tq:(b + 1) * tq, h * dim_k:(h + 1) * dim_k]
            kh = k_b[:, h * dim_k:(h + 1) * dim_k]
            vh = v_b[:, h * dim_v:(h + 1) * dim_v]

            s = jax.lax.dot_general(qh, kh, (((1,), (1,)), ((), ())),
                                    preferred_element_type=jnp.float32)     # (tq, nkv)
            s = s - jnp.max(s, axis=-1, keepdims=True)
            p = jnp.exp(s)                                                  # unnormalized
            denom = jnp.sum(p, axis=-1, keepdims=True)

            oh = jnp.dot(p.astype(jnp.bfloat16), vh,
                         preferred_element_type=jnp.float32)                # (tq, dv)
            oh = oh * pl.reciprocal(denom, approx=True)                     # deferred 1/sum
            oh_list.append(oh.astype(jnp.bfloat16))
        o_rows.append(jnp.concatenate(oh_list, axis=-1) if n_heads > 1 else oh_list[0])
    o_all = jnp.concatenate(o_rows, axis=0) if bblk > 1 else o_rows[0]      # (mq, H*dv) bf16

    # ---- Single fused output projection: (mq, H*dv) @ (H*dv, d_model).
    out = jnp.dot(o_all, wp_ref[...], preferred_element_type=jnp.float32) + bp_ref[...]
    out_ref[...] = out.reshape(bblk, tq, d_model)


def _sr_conv_tokens(x_nchw, params, sr_ratio):
    """Depthwise sr conv (stride=sr, k=sr+1, pad=sr//2, groups=d_model). Pre-LN tokens."""
    B, d_model, H, W = x_nchw.shape
    pad = sr_ratio // 2
    y = jax.lax.conv_general_dilated(
        x_nchw, params["w_sr"],
        window_strides=(sr_ratio, sr_ratio),
        padding=((pad, pad), (pad, pad)),
        dimension_numbers=("NCHW", "OIHW", "NCHW"),
        feature_group_count=d_model)
    y = y + params["b_sr"][None, :, None, None]
    Bo, Co, Ho, Wo = y.shape
    return jnp.transpose(y.reshape(Bo, Co, Ho * Wo), (0, 2, 1))   # (B, nkv, d_model)


def _pick_tq(nq, nkv):
    """Largest query tile (multiple of 8) dividing nq, capped by a VMEM-aware limit."""
    cap = 256 if nkv >= 2048 else 512       # tighter cap keeps (tq, nkv) f32 scores small (v7x)
    if nq <= cap:
        return nq
    for t in range(cap, 7, -8):
        if nq % t == 0:
            return t
    # TODO(synk): awkward nq with no multiple-of-8 divisor <= cap falls back to a full-nq
    #             block; consider a cdiv grid with masked remainder if this ever triggers.
    return nq


def _pick_bblk(batch, nq, tq):
    """Fold batches per grid step when per-batch work is tiny (keeps M <= 512 rows)."""
    if tq != nq:
        return 1
    best = 1
    for cand in range(1, batch + 1):
        if batch % cand == 0 and cand * nq <= 512:
            best = cand
    return best


def emsa_forward(x_nchw, params, *, n_heads, dim_k, dim_v, scale, sr_ratio):
    B, d_model, H, W = x_nchw.shape
    nq = H * W
    x_tokens = jnp.transpose(x_nchw.reshape(B, d_model, nq), (0, 2, 1))  # (B, nq, d_model)

    fuse_ln = sr_ratio > 1
    x_kv = _sr_conv_tokens(x_nchw, params, sr_ratio) if fuse_ln else x_tokens
    nkv = x_kv.shape[1]

    tq = _pick_tq(nq, nkv)
    bblk = _pick_bblk(B, nq, tq)
    grid = (B // bblk, nq // tq)

    # Fused lane-dense weight layouts; softmax scale folded into Wq.
    wq = (params["wq"] * scale).astype(jnp.bfloat16)        # (d_model, H*dk)
    wk = params["wk"].astype(jnp.bfloat16)                  # (d_model, H*dk)
    wv = params["wv"].astype(jnp.bfloat16)                  # (d_model, H*dv)
    wp = params["w_proj"].astype(jnp.bfloat16)              # (H*dv, d_model)
    bp = params["b_proj"].astype(jnp.float32)               # (1, d_model)

    kernel = functools.partial(_emsa_kernel, n_heads=n_heads, dim_k=dim_k,
                               dim_v=dim_v, bblk=bblk, fuse_ln=fuse_ln)

    in_specs = [
        pl.BlockSpec((bblk, tq, d_model), lambda b, qi: (b, qi, 0)),            # x_q
        pl.BlockSpec((bblk, nkv, d_model), lambda b, qi: (b, 0, 0)),            # x_kv (qi-invariant)
        pl.BlockSpec((d_model, n_heads * dim_k), lambda b, qi: (0, 0)),         # Wq (scaled)
        pl.BlockSpec((d_model, n_heads * dim_k), lambda b, qi: (0, 0)),         # Wk
        pl.BlockSpec((d_model, n_heads * dim_v), lambda b, qi: (0, 0)),         # Wv
        pl.BlockSpec((n_heads * dim_v, d_model), lambda b, qi: (0, 0)),         # Wproj
        pl.BlockSpec((1, d_model), lambda b, qi: (0, 0)),                       # bproj
    ]
    args = [x_tokens, x_kv, wq, wk, wv, wp, bp]
    if fuse_ln:
        in_specs += [pl.BlockSpec((1, d_model), lambda b, qi: (0, 0)),
                     pl.BlockSpec((1, d_model), lambda b, qi: (0, 0))]
        args += [params["ln_g"].reshape(1, d_model).astype(jnp.float32),
                 params["ln_b"].reshape(1, d_model).astype(jnp.float32)]

    out_tokens = pl.pallas_call(
        kernel,
        out_shape=jax.ShapeDtypeStruct((B, nq, d_model), jnp.float32),
        grid=grid,
        in_specs=in_specs,
        out_specs=pl.BlockSpec((bblk, tq, d_model), lambda b, qi: (b, qi, 0)),
        scratch_shapes=[
            pltpu.VMEM((bblk * nkv, n_heads * dim_k), jnp.bfloat16),   # K cache (per batch block)
            pltpu.VMEM((bblk * nkv, n_heads * dim_v), jnp.bfloat16),   # V cache (per batch block)
        ],
        compiler_params=pltpu.CompilerParams(
            # qi must be "arbitrary": the K/V cache fill at qi==0 requires sequential
            # iteration of the query-tile axis; batch axis stays "parallel" (megacore).
            dimension_semantics=("parallel", "arbitrary"),
            vmem_limit_bytes=40 * 1024 * 1024),
    )(*args)

    # (B, nq, d_model) -> (B, H, W, d_model) -> (B, d_model, H, W)
    return jnp.transpose(out_tokens.reshape(B, H, W, d_model), (0, 3, 1, 2))


def emsa_reference(x_nchw, params, *, n_heads, dim_k, dim_v, scale, sr_ratio):
    """Pure-JAX f32 reference mirroring the PyTorch forward (defaults path)."""
    B, d_model, H, W = x_nchw.shape
    nq = H * W
    x_tokens = jnp.transpose(x_nchw.reshape(B, d_model, nq), (0, 2, 1))
    if sr_ratio > 1:
        x_kv = _sr_conv_tokens(x_nchw, params, sr_ratio)
        mu = jnp.mean(x_kv, axis=-1, keepdims=True)
        var = jnp.mean((x_kv - mu) ** 2, axis=-1, keepdims=True)
        x_kv = (x_kv - mu) / jnp.sqrt(var + 1e-5)
        x_kv = x_kv * params["ln_g"] + params["ln_b"]
    else:
        x_kv = x_tokens
    nkv = x_kv.shape[1]

    q = (x_tokens @ params["wq"]).reshape(B, nq, n_heads, dim_k).transpose(0, 2, 1, 3)
    k = (x_kv @ params["wk"]).reshape(B, nkv, n_heads, dim_k).transpose(0, 2, 3, 1)
    v = (x_kv @ params["wv"]).reshape(B, nkv, n_heads, dim_v).transpose(0, 2, 1, 3)
    attn = jax.nn.softmax(jnp.einsum("bhqd,bhdk->bhqk", q, k) * scale, axis=-1)
    out = jnp.einsum("bhqk,bhkd->bhqd", attn, v).transpose(0, 2, 1, 3).reshape(
        B, nq, n_heads * dim_v)
    out = out @ params["w_proj"] + params["b_proj"]
    return jnp.transpose(out.reshape(B, H, W, d_model), (0, 3, 1, 2))


def make_params(key, d_model, n_heads, dim_k, dim_v, sr_ratio):
    ks = jax.random.split(key, 8)
    p = {
        # stored transposed relative to torch Linear.weight: (in, out)
        "wq": jax.random.normal(ks[0], (d_model, n_heads * dim_k), jnp.float32) * 0.1,
        "wk": jax.random.normal(ks[1], (d_model, n_heads * dim_k), jnp.float32) * 0.1,
        "wv": jax.random.normal(ks[2], (d_model, n_heads * dim_v), jnp.float32) * 0.1,
        "w_proj": jax.random.normal(ks[3], (n_heads * dim_v, d_model), jnp.float32) * 0.1,
        "b_proj": jax.random.normal(ks[4], (1, d_model), jnp.float32) * 0.1,
    }
    if sr_ratio > 1:
        ksz = sr_ratio + 1
        p["w_sr"] = jax.random.normal(ks[5], (d_model, 1, ksz, ksz), jnp.float32) * 0.1
        p["b_sr"] = jax.random.normal(ks[6], (d_model,), jnp.float32) * 0.1
        p["ln_g"] = jnp.ones((d_model,), jnp.float32)
        p["ln_b"] = jnp.zeros((d_model,), jnp.float32)
    return p


if __name__ == "__main__":
    B, d_model, H, W = 2, 32, 8, 8
    n_heads = 4
    dim_k = dim_v = d_model // n_heads       # torch defaults (dim_k=dim_v=None)
    scale = dim_k ** (-0.5)

    key = jax.random.PRNGKey(0)
    kx, kp1, kp2 = jax.random.split(key, 3)
    x = jax.random.normal(kx, (B, d_model, H, W), jnp.float32)

    ok = True
    for sr_ratio, kp in ((1, kp1), (2, kp2)):
        params = make_params(kp, d_model, n_heads, dim_k, dim_v, sr_ratio)
        out = emsa_forward(x, params, n_heads=n_heads, dim_k=dim_k, dim_v=dim_v,
                           scale=scale, sr_ratio=sr_ratio)
        out = jax.block_until_ready(out)
        ref = emsa_reference(x, params, n_heads=n_heads, dim_k=dim_k, dim_v=dim_v,
                             scale=scale, sr_ratio=sr_ratio)
        ok = ok and out.shape == (B, d_model, H, W)
        # bf16 matmul operands + approx reciprocal vs f32 reference -> bf16 tolerance
        ok = ok and np.allclose(np.asarray(out), np.asarray(ref), rtol=2e-2, atol=2e-2)

    if ok:
        print("KERNEL_OK")
    else:
        print("KERNEL_MISMATCH")
</pallas_src>

<mosaic_0001>
module attributes {stable_mosaic.version = 11 : i64} {
  func.func @_emsa_kernel(%arg0: i32, %arg1: i32, %arg2: memref<2x64x32xf32, #tpu.memory_space<vmem>>, %arg3: memref<2x64x32xf32, #tpu.memory_space<vmem>>, %arg4: memref<32x32xbf16, #tpu.memory_space<vmem>>, %arg5: memref<32x32xbf16, #tpu.memory_space<vmem>>, %arg6: memref<32x32xbf16, #tpu.memory_space<vmem>>, %arg7: memref<32x32xbf16, #tpu.memory_space<vmem>>, %arg8: memref<1x32xf32, #tpu.memory_space<vmem>>, %arg9: memref<2x64x32xf32, #tpu.memory_space<vmem>>, %arg10: memref<128x32xbf16, #tpu.memory_space<vmem>>, %arg11: memref<128x32xbf16, #tpu.memory_space<vmem>>) attributes {dimension_semantics = [#tpu.dimension_semantics<parallel>, #tpu.dimension_semantics<arbitrary>], iteration_bounds = array<i64: 1, 1>, scalar_prefetch = 0 : i64, scratch_operands = 2 : i64, tpu.core_type = #tpu.core_type<tc>, window_params = [{transform_indices = @transform_0, window_bounds = array<i64: 2, 64, 32>}, {transform_indices = @transform_1, window_bounds = array<i64: 2, 64, 32>}, {pipeline_mode = #tpu.pipeline_mode<synchronous>, transform_indices = @transform_2, window_bounds = array<i64: 32, 32>}, {pipeline_mode = #tpu.pipeline_mode<synchronous>, transform_indices = @transform_3, window_bounds = array<i64: 32, 32>}, {pipeline_mode = #tpu.pipeline_mode<synchronous>, transform_indices = @transform_4, window_bounds = array<i64: 32, 32>}, {pipeline_mode = #tpu.pipeline_mode<synchronous>, transform_indices = @transform_5, window_bounds = array<i64: 32, 32>}, {pipeline_mode = #tpu.pipeline_mode<synchronous>, transform_indices = @transform_6, window_bounds = array<i64: 1, 32>}, {transform_indices = @transform_7, window_bounds = array<i64: 2, 64, 32>}]} {
    %c0_i32 = arith.constant 0 : i32
    %0 = arith.cmpi eq, %arg1, %c0_i32 : i32
    %1 = arith.extui %0 : i1 to i32
    %c0_i32_0 = arith.constant 0 : i32
    %2 = arith.cmpi ne, %1, %c0_i32_0 : i32
    scf.if %2 {
      %c0_52 = arith.constant 0 : index
      %c0_53 = arith.constant 0 : index
      %c0_54 = arith.constant 0 : index
      %159 = vector.load %arg3[%c0_52, %c0_53, %c0_54] : memref<2x64x32xf32, #tpu.memory_space<vmem>>, vector<2x64x32xf32>
      %160 = vector.shape_cast %159 : vector<2x64x32xf32> to vector<128x32xf32>
      %161 = arith.truncf %160 : vector<128x32xf32> to vector<128x32xbf16>
      %c0_55 = arith.constant 0 : index
      %c0_56 = arith.constant 0 : index
      %162 = vector.load %arg5[%c0_55, %c0_56] : memref<32x32xbf16, #tpu.memory_space<vmem>>, vector<32x32xbf16>
      %cst_57 = arith.constant dense<0.000000e+00> : vector<128x32xf32>
      %163 = tpu.matmul %161, %162, %cst_57 {dimension_numbers = #tpu.dot_dimension_numbers<[1], [0], [0], [1], [0, 0, 1, 1], [], []>} : vector<128x32xbf16>, vector<32x32xbf16>, vector<128x32xf32> -> vector<128x32xf32>
      %164 = arith.truncf %163 : vector<128x32xf32> to vector<128x32xbf16>
      %c0_58 = arith.constant 0 : index
      %c0_59 = arith.constant 0 : index
      %165 = vector.load %arg10[%c0_58, %c0_59] : memref<128x32xbf16, #tpu.memory_space<vmem>>, vector<128x32xbf16>
      tpu.vector_store %arg10[%c0_58, %c0_59], %164 {strides = array<i32>} : memref<128x32xbf16, #tpu.memory_space<vmem>>, vector<128x32xbf16>,
      %c0_60 = arith.constant 0 : index
      %c0_61 = arith.constant 0 : index
      %166 = vector.load %arg6[%c0_60, %c0_61] : memref<32x32xbf16, #tpu.memory_space<vmem>>, vector<32x32xbf16>
      %cst_62 = arith.constant dense<0.000000e+00> : vector<128x32xf32>
      %167 = tpu.matmul %161, %166, %cst_62 {dimension_numbers = #tpu.dot_dimension_numbers<[1], [0], [0], [1], [0, 0, 1, 1], [], []>} : vector<128x32xbf16>, vector<32x32xbf16>, vector<128x32xf32> -> vector<128x32xf32>
      %168 = arith.truncf %167 : vector<128x32xf32> to vector<128x32xbf16>
      %c0_63 = arith.constant 0 : index
      %c0_64 = arith.constant 0 : index
      %169 = vector.load %arg11[%c0_63, %c0_64] : memref<128x32xbf16, #tpu.memory_space<vmem>>, vector<128x32xbf16>
      tpu.vector_store %arg11[%c0_63, %c0_64], %168 {strides = array<i32>} : memref<128x32xbf16, #tpu.memory_space<vmem>>, vector<128x32xbf16>,
    } else {
    }
    %c0 = arith.constant 0 : index
    %c0_1 = arith.constant 0 : index
    %c0_2 = arith.constant 0 : index
    %3 = vector.load %arg2[%c0, %c0_1, %c0_2] : memref<2x64x32xf32, #tpu.memory_space<vmem>>, vector<2x64x32xf32>
    %4 = vector.shape_cast %3 : vector<2x64x32xf32> to vector<128x32xf32>
    %5 = arith.truncf %4 : vector<128x32xf32> to vector<128x32xbf16>
    %c0_3 = arith.constant 0 : index
    %c0_4 = arith.constant 0 : index
    %6 = vector.load %arg4[%c0_3, %c0_4] : memref<32x32xbf16, #tpu.memory_space<vmem>>, vector<32x32xbf16>
    %cst = arith.constant dense<0.000000e+00> : vector<128x32xf32>
    %7 = tpu.matmul %5, %6, %cst {dimension_numbers = #tpu.dot_dimension_numbers<[1], [0], [0], [1], [0, 0, 1, 1], [], []>} : vector<128x32xbf16>, vector<32x32xbf16>, vector<128x32xf32> -> vector<128x32xf32>
    %8 = arith.truncf %7 : vector<128x32xf32> to vector<128x32xbf16>
    %c0_5 = arith.constant 0 : index
    %c0_6 = arith.constant 0 : index
    %9 = vector.load %arg10[%c0_5, %c0_6] : memref<128x32xbf16, #tpu.memory_space<vmem>>, vector<64x32xbf16>
    %c0_7 = arith.constant 0 : index
    %c0_8 = arith.constant 0 : index
    %10 = vector.load %arg11[%c0_7, %c0_8] : memref<128x32xbf16, #tpu.memory_space<vmem>>, vector<64x32xbf16>
    %11 = vector.extract_strided_slice %8 {offsets = [0, 0], sizes = [64, 8], strides = [1, 1]} : vector<128x32xbf16> to vector<64x8xbf16>
    %12 = vector.extract_strided_slice %9 {offsets = [0, 0], sizes = [64, 8], strides = [1, 1]} : vector<64x32xbf16> to vector<64x8xbf16>
    %13 = vector.extract_strided_slice %10 {offsets = [0, 0], sizes = [64, 8], strides = [1, 1]} : vector<64x32xbf16> to vector<64x8xbf16>
    %cst_9 = arith.constant dense<0.000000e+00> : vector<64x64xf32>
    %14 = tpu.matmul %11, %12, %cst_9 {dimension_numbers = #tpu.dot_dimension_numbers<[1], [1], [0], [0], [0, 0, 1, 0], [], []>} : vector<64x8xbf16>, vector<64x8xbf16>, vector<64x64xf32> -> vector<64x64xf32>
    %cst_10 = arith.constant dense<0xFF800000> : vector<64xf32>
    %15 = vector.multi_reduction <maximumf>, %14, %cst_10 [1] : vector<64x64xf32> to vector<64xf32>
    %16 = vector.shape_cast %15 : vector<64xf32> to vector<64x1xf32>
    %17 = vector.broadcast %16 : vector<64x1xf32> to vector<64x64xf32>
    %18 = arith.subf %14, %17 : vector<64x64xf32>
    %19 = math.exp %18 : vector<64x64xf32>
    %cst_11 = arith.constant dense<0.000000e+00> : vector<64xf32>
    %20 = vector.multi_reduction <add>, %19, %cst_11 [1] : vector<64x64xf32> to vector<64xf32>
    %21 = vector.shape_cast %20 : vector<64xf32> to vector<64x1xf32>
    %22 = arith.truncf %19 : vector<64x64xf32> to vector<64x64xbf16>
    %cst_12 = arith.constant dense<0.000000e+00> : vector<64x8xf32>
    %23 = tpu.matmul %22, %13, %cst_12 {dimension_numbers = #tpu.dot_dimension_numbers<[1], [0], [0], [1], [0, 0, 1, 1], [], []>} : vector<64x64xbf16>, vector<64x8xbf16>, vector<64x8xf32> -> vector<64x8xf32>
    %24 = tpu.reciprocal %21 {approx = true} : vector<64x1xf32> -> vector<64x1xf32>
    %25 = vector.broadcast %24 : vector<64x1xf32> to vector<64x8xf32>
    %26 = arith.mulf %23, %25 : vector<64x8xf32>
    %27 = arith.truncf %26 : vector<64x8xf32> to vector<64x8xbf16>
    %28 = vector.extract_strided_slice %8 {offsets = [0, 8], sizes = [64, 8], strides = [1, 1]} : vector<128x32xbf16> to vector<64x8xbf16>
    %29 = vector.extract_strided_slice %9 {offsets = [0, 8], sizes = [64, 8], strides = [1, 1]} : vector<64x32xbf16> to vector<64x8xbf16>
    %30 = vector.extract_strided_slice %10 {offsets = [0, 8], sizes = [64, 8], strides = [1, 1]} : vector<64x32xbf16> to vector<64x8xbf16>
    %cst_13 = arith.constant dense<0.000000e+00> : vector<64x64xf32>
    %31 = tpu.matmul %28, %29, %cst_13 {dimension_numbers = #tpu.dot_dimension_numbers<[1], [1], [0], [0], [0, 0, 1, 0], [], []>} : vector<64x8xbf16>, vector<64x8xbf16>, vector<64x64xf32> -> vector<64x64xf32>
    %cst_14 = arith.constant dense<0xFF800000> : vector<64xf32>
    %32 = vector.multi_reduction <maximumf>, %31, %cst_14 [1] : vector<64x64xf32> to vector<64xf32>
    %33 = vector.shape_cast %32 : vector<64xf32> to vector<64x1xf32>
    %34 = vector.broadcast %33 : vector<64x1xf32> to vector<64x64xf32>
    %35 = arith.subf %31, %34 : vector<64x64xf32>
    %36 = math.exp %35 : vector<64x64xf32>
    %cst_15 = arith.constant dense<0.000000e+00> : vector<64xf32>
    %37 = vector.multi_reduction <add>, %36, %cst_15 [1] : vector<64x64xf32> to vector<64xf32>
    %38 = vector.shape_cast %37 : vector<64xf32> to vector<64x1xf32>
    %39 = arith.truncf %36 : vector<64x64xf32> to vector<64x64xbf16>
    %cst_16 = arith.constant dense<0.000000e+00> : vector<64x8xf32>
    %40 = tpu.matmul %39, %30, %cst_16 {dimension_numbers = #tpu.dot_dimension_numbers<[1], [0], [0], [1], [0, 0, 1, 1], [], []>} : vector<64x64xbf16>, vector<64x8xbf16>, vector<64x8xf32> -> vector<64x8xf32>
    %41 = tpu.reciprocal %38 {approx = true} : vector<64x1xf32> -> vector<64x1xf32>
    %42 = vector.broadcast %41 : vector<64x1xf32> to vector<64x8xf32>
    %43 = arith.mulf %40, %42 : vector<64x8xf32>
    %44 = arith.truncf %43 : vector<64x8xf32> to vector<64x8xbf16>
    %45 = vector.extract_strided_slice %8 {offsets = [0, 16], sizes = [64, 8], strides = [1, 1]} : vector<128x32xbf16> to vector<64x8xbf16>
    %46 = vector.extract_strided_slice %9 {offsets = [0, 16], sizes = [64, 8], strides = [1, 1]} : vector<64x32xbf16> to vector<64x8xbf16>
    %47 = vector.extract_strided_slice %10 {offsets = [0, 16], sizes = [64, 8], strides = [1, 1]} : vector<64x32xbf16> to vector<64x8xbf16>
    %cst_17 = arith.constant dense<0.000000e+00> : vector<64x64xf32>
    %48 = tpu.matmul %45, %46, %cst_17 {dimension_numbers = #tpu.dot_dimension_numbers<[1], [1], [0], [0], [0, 0, 1, 0], [], []>} : vector<64x8xbf16>, vector<64x8xbf16>, vector<64x64xf32> -> vector<64x64xf32>
    %cst_18 = arith.constant dense<0xFF800000> : vector<64xf32>
    %49 = vector.multi_reduction <maximumf>, %48, %cst_18 [1] : vector<64x64xf32> to vector<64xf32>
    %50 = vector.shape_cast %49 : vector<64xf32> to vector<64x1xf32>
    %51 = vector.broadcast %50 : vector<64x1xf32> to vector<64x64xf32>
    %52 = arith.subf %48, %51 : vector<64x64xf32>
    %53 = math.exp %52 : vector<64x64xf32>
    %cst_19 = arith.constant dense<0.000000e+00> : vector<64xf32>
    %54 = vector.multi_reduction <add>, %53, %cst_19 [1] : vector<64x64xf32> to vector<64xf32>
    %55 = vector.shape_cast %54 : vector<64xf32> to vector<64x1xf32>
    %56 = arith.truncf %53 : vector<64x64xf32> to vector<64x64xbf16>
    %cst_20 = arith.constant dense<0.000000e+00> : vector<64x8xf32>
    %57 = tpu.matmul %56, %47, %cst_20 {dimension_numbers = #tpu.dot_dimension_numbers<[1], [0], [0], [1], [0, 0, 1, 1], [], []>} : vector<64x64xbf16>, vector<64x8xbf16>, vector<64x8xf32> -> vector<64x8xf32>
    %58 = tpu.reciprocal %55 {approx = true} : vector<64x1xf32> -> vector<64x1xf32>
    %59 = vector.broadcast %58 : vector<64x1xf32> to vector<64x8xf32>
    %60 = arith.mulf %57, %59 : vector<64x8xf32>
    %61 = arith.truncf %60 : vector<64x8xf32> to vector<64x8xbf16>
    %62 = vector.extract_strided_slice %8 {offsets = [0, 24], sizes = [64, 8], strides = [1, 1]} : vector<128x32xbf16> to vector<64x8xbf16>
    %63 = vector.extract_strided_slice %9 {offsets = [0, 24], sizes = [64, 8], strides = [1, 1]} : vector<64x32xbf16> to vector<64x8xbf16>
    %64 = vector.extract_strided_slice %10 {offsets = [0, 24], sizes = [64, 8], strides = [1, 1]} : vector<64x32xbf16> to vector<64x8xbf16>
    %cst_21 = arith.constant dense<0.000000e+00> : vector<64x64xf32>
    %65 = tpu.matmul %62, %63, %cst_21 {dimension_numbers = #tpu.dot_dimension_numbers<[1], [1], [0], [0], [0, 0, 1, 0], [], []>} : vector<64x8xbf16>, vector<64x8xbf16>, vector<64x64xf32> -> vector<64x64xf32>
    %cst_22 = arith.constant dense<0xFF800000> : vector<64xf32>
    %66 = vector.multi_reduction <maximumf>, %65, %cst_22 [1] : vector<64x64xf32> to vector<64xf32>
    %67 = vector.shape_cast %66 : vector<64xf32> to vector<64x1xf32>
    %68 = vector.broadcast %67 : vector<64x1xf32> to vector<64x64xf32>
    %69 = arith.subf %65, %68 : vector<64x64xf32>
    %70 = math.exp %69 : vector<64x64xf32>
    %cst_23 = arith.constant dense<0.000000e+00> : vector<64xf32>
    %71 = vector.multi_reduction <add>, %70, %cst_23 [1] : vector<64x64xf32> to vector<64xf32>
    %72 = vector.shape_cast %71 : vector<64xf32> to vector<64x1xf32>
    %73 = arith.truncf %70 : vector<64x64xf32> to vector<64x64xbf16>
    %cst_24 = arith.constant dense<0.000000e+00> : vector<64x8xf32>
    %74 = tpu.matmul %73, %64, %cst_24 {dimension_numbers = #tpu.dot_dimension_numbers<[1], [0], [0], [1], [0, 0, 1, 1], [], []>} : vector<64x64xbf16>, vector<64x8xbf16>, vector<64x8xf32> -> vector<64x8xf32>
    %75 = tpu.reciprocal %72 {approx = true} : vector<64x1xf32> -> vector<64x1xf32>
    %76 = vector.broadcast %75 : vector<64x1xf32> to vector<64x8xf32>
    %77 = arith.mulf %74, %76 : vector<64x8xf32>
    %78 = arith.truncf %77 : vector<64x8xf32> to vector<64x8xbf16>
    %79 = tpu.concatenate %27, %44, %61, %78 in 1 : vector<64x8xbf16>, vector<64x8xbf16>, vector<64x8xbf16>, vector<64x8xbf16> -> vector<64x32xbf16>
    %c64 = arith.constant 64 : index
    %c0_25 = arith.constant 0 : index
    %80 = vector.load %arg10[%c64, %c0_25] : memref<128x32xbf16, #tpu.memory_space<vmem>>, vector<64x32xbf16>
    %c64_26 = arith.constant 64 : index
    %c0_27 = arith.constant 0 : index
    %81 = vector.load %arg11[%c64_26, %c0_27] : memref<128x32xbf16, #tpu.memory_space<vmem>>, vector<64x32xbf16>
    %82 = vector.extract_strided_slice %8 {offsets = [64, 0], sizes = [64, 8], strides = [1, 1]} : vector<128x32xbf16> to vector<64x8xbf16>
    %83 = vector.extract_strided_slice %80 {offsets = [0, 0], sizes = [64, 8], strides = [1, 1]} : vector<64x32xbf16> to vector<64x8xbf16>
    %84 = vector.extract_strided_slice %81 {offsets = [0, 0], sizes = [64, 8], strides = [1, 1]} : vector<64x32xbf16> to vector<64x8xbf16>
    %cst_28 = arith.constant dense<0.000000e+00> : vector<64x64xf32>
    %85 = tpu.matmul %82, %83, %cst_28 {dimension_numbers = #tpu.dot_dimension_numbers<[1], [1], [0], [0], [0, 0, 1, 0], [], []>} : vector<64x8xbf16>, vector<64x8xbf16>, vector<64x64xf32> -> vector<64x64xf32>
    %cst_29 = arith.constant dense<0xFF800000> : vector<64xf32>
    %86 = vector.multi_reduction <maximumf>, %85, %cst_29 [1] : vector<64x64xf32> to vector<64xf32>
    %87 = vector.shape_cast %86 : vector<64xf32> to vector<64x1xf32>
    %88 = vector.broadcast %87 : vector<64x1xf32> to vector<64x64xf32>
    %89 = arith.subf %85, %88 : vector<64x64xf32>
    %90 = math.exp %89 : vector<64x64xf32>
    %cst_30 = arith.constant dense<0.000000e+00> : vector<64xf32>
    %91 = vector.multi_reduction <add>, %90, %cst_30 [1] : vector<64x64xf32> to vector<64xf32>
    %92 = vector.shape_cast %91 : vector<64xf32> to vector<64x1xf32>
    %93 = arith.truncf %90 : vector<64x64xf32> to vector<64x64xbf16>
    %cst_31 = arith.constant dense<0.000000e+00> : vector<64x8xf32>
    %94 = tpu.matmul %93, %84, %cst_31 {dimension_numbers = #tpu.dot_dimension_numbers<[1], [0], [0], [1], [0, 0, 1, 1], [], []>} : vector<64x64xbf16>, vector<64x8xbf16>, vector<64x8xf32> -> vector<64x8xf32>
    %95 = tpu.reciprocal %92 {approx = true} : vector<64x1xf32> -> vector<64x1xf32>
    %96 = vector.broadcast %95 : vector<64x1xf32> to vector<64x8xf32>
    %97 = arith.mulf %94, %96 : vector<64x8xf32>
    %98 = arith.truncf %97 : vector<64x8xf32> to vector<64x8xbf16>
    %99 = vector.extract_strided_slice %8 {offsets = [64, 8], sizes = [64, 8], strides = [1, 1]} : vector<128x32xbf16> to vector<64x8xbf16>
    %100 = vector.extract_strided_slice %80 {offsets = [0, 8], sizes = [64, 8], strides = [1, 1]} : vector<64x32xbf16> to vector<64x8xbf16>
    %101 = vector.extract_strided_slice %81 {offsets = [0, 8], sizes = [64, 8], strides = [1, 1]} : vector<64x32xbf16> to vector<64x8xbf16>
    %cst_32 = arith.constant dense<0.000000e+00> : vector<64x64xf32>
    %102 = tpu.matmul %99, %100, %cst_32 {dimension_numbers = #tpu.dot_dimension_numbers<[1], [1], [0], [0], [0, 0, 1, 0], [], []>} : vector<64x8xbf16>, vector<64x8xbf16>, vector<64x64xf32> -> vector<64x64xf32>
    %cst_33 = arith.constant dense<0xFF800000> : vector<64xf32>
    %103 = vector.multi_reduction <maximumf>, %102, %cst_33 [1] : vector<64x64xf32> to vector<64xf32>
    %104 = vector.shape_cast %103 : vector<64xf32> to vector<64x1xf32>
    %105 = vector.broadcast %104 : vector<64x1xf32> to vector<64x64xf32>
    %106 = arith.subf %102, %105 : vector<64x64xf32>
    %107 = math.exp %106 : vector<64x64xf32>
    %cst_34 = arith.constant dense<0.000000e+00> : vector<64xf32>
    %108 = vector.multi_reduction <add>, %107, %cst_34 [1] : vector<64x64xf32> to vector<64xf32>
    %109 = vector.shape_cast %108 : vector<64xf32> to vector<64x1xf32>
    %110 = arith.truncf %107 : vector<64x64xf32> to vector<64x64xbf16>
    %cst_35 = arith.constant dense<0.000000e+00> : vector<64x8xf32>
    %111 = tpu.matmul %110, %101, %cst_35 {dimension_numbers = #tpu.dot_dimension_numbers<[1], [0], [0], [1], [0, 0, 1, 1], [], []>} : vector<64x64xbf16>, vector<64x8xbf16>, vector<64x8xf32> -> vector<64x8xf32>
    %112 = tpu.reciprocal %109 {approx = true} : vector<64x1xf32> -> vector<64x1xf32>
    %113 = vector.broadcast %112 : vector<64x1xf32> to vector<64x8xf32>
    %114 = arith.mulf %111, %113 : vector<64x8xf32>
    %115 = arith.truncf %114 : vector<64x8xf32> to vector<64x8xbf16>
    %116 = vector.extract_strided_slice %8 {offsets = [64, 16], sizes = [64, 8], strides = [1, 1]} : vector<128x32xbf16> to vector<64x8xbf16>
    %117 = vector.extract_strided_slice %80 {offsets = [0, 16], sizes = [64, 8], strides = [1, 1]} : vector<64x32xbf16> to vector<64x8xbf16>
    %118 = vector.extract_strided_slice %81 {offsets = [0, 16], sizes = [64, 8], strides = [1, 1]} : vector<64x32xbf16> to vector<64x8xbf16>
    %cst_36 = arith.constant dense<0.000000e+00> : vector<64x64xf32>
    %119 = tpu.matmul %116, %117, %cst_36 {dimension_numbers = #tpu.dot_dimension_numbers<[1], [1], [0], [0], [0, 0, 1, 0], [], []>} : vector<64x8xbf16>, vector<64x8xbf16>, vector<64x64xf32> -> vector<64x64xf32>
    %cst_37 = arith.constant dense<0xFF800000> : vector<64xf32>
    %120 = vector.multi_reduction <maximumf>, %119, %cst_37 [1] : vector<64x64xf32> to vector<64xf32>
    %121 = vector.shape_cast %120 : vector<64xf32> to vector<64x1xf32>
    %122 = vector.broadcast %121 : vector<64x1xf32> to vector<64x64xf32>
    %123 = arith.subf %119, %122 : vector<64x64xf32>
    %124 = math.exp %123 : vector<64x64xf32>
    %cst_38 = arith.constant dense<0.000000e+00> : vector<64xf32>
    %125 = vector.multi_reduction <add>, %124, %cst_38 [1] : vector<64x64xf32> to vector<64xf32>
    %126 = vector.shape_cast %125 : vector<64xf32> to vector<64x1xf32>
    %127 = arith.truncf %124 : vector<64x64xf32> to vector<64x64xbf16>
    %cst_39 = arith.constant dense<0.000000e+00> : vector<64x8xf32>
    %128 = tpu.matmul %127, %118, %cst_39 {dimension_numbers = #tpu.dot_dimension_numbers<[1], [0], [0], [1], [0, 0, 1, 1], [], []>} : vector<64x64xbf16>, vector<64x8xbf16>, vector<64x8xf32> -> vector<64x8xf32>
    %129 = tpu.reciprocal %126 {approx = true} : vector<64x1xf32> -> vector<64x1xf32>
    %130 = vector.broadcast %129 : vector<64x1xf32> to vector<64x8xf32>
    %131 = arith.mulf %128, %130 : vector<64x8xf32>
    %132 = arith.truncf %131 : vector<64x8xf32> to vector<64x8xbf16>
    %133 = vector.extract_strided_slice %8 {offsets = [64, 24], sizes = [64, 8], strides = [1, 1]} : vector<128x32xbf16> to vector<64x8xbf16>
    %134 = vector.extract_strided_slice %80 {offsets = [0, 24], sizes = [64, 8], strides = [1, 1]} : vector<64x32xbf16> to vector<64x8xbf16>
    %135 = vector.extract_strided_slice %81 {offsets = [0, 24], sizes = [64, 8], strides = [1, 1]} : vector<64x32xbf16> to vector<64x8xbf16>
    %cst_40 = arith.constant dense<0.000000e+00> : vector<64x64xf32>
    %136 = tpu.matmul %133, %134, %cst_40 {dimension_numbers = #tpu.dot_dimension_numbers<[1], [1], [0], [0], [0, 0, 1, 0], [], []>} : vector<64x8xbf16>, vector<64x8xbf16>, vector<64x64xf32> -> vector<64x64xf32>
    %cst_41 = arith.constant dense<0xFF800000> : vector<64xf32>
    %137 = vector.multi_reduction <maximumf>, %136, %cst_41 [1] : vector<64x64xf32> to vector<64xf32>
    %138 = vector.shape_cast %137 : vector<64xf32> to vector<64x1xf32>
    %139 = vector.broadcast %138 : vector<64x1xf32> to vector<64x64xf32>
    %140 = arith.subf %136, %139 : vector<64x64xf32>
    %141 = math.exp %140 : vector<64x64xf32>
    %cst_42 = arith.constant dense<0.000000e+00> : vector<64xf32>
    %142 = vector.multi_reduction <add>, %141, %cst_42 [1] : vector<64x64xf32> to vector<64xf32>
    %143 = vector.shape_cast %142 : vector<64xf32> to vector<64x1xf32>
    %144 = arith.truncf %141 : vector<64x64xf32> to vector<64x64xbf16>
    %cst_43 = arith.constant dense<0.000000e+00> : vector<64x8xf32>
    %145 = tpu.matmul %144, %135, %cst_43 {dimension_numbers = #tpu.dot_dimension_numbers<[1], [0], [0], [1], [0, 0, 1, 1], [], []>} : vector<64x64xbf16>, vector<64x8xbf16>, vector<64x8xf32> -> vector<64x8xf32>
    %146 = tpu.reciprocal %143 {approx = true} : vector<64x1xf32> -> vector<64x1xf32>
    %147 = vector.broadcast %146 : vector<64x1xf32> to vector<64x8xf32>
    %148 = arith.mulf %145, %147 : vector<64x8xf32>
    %149 = arith.truncf %148 : vector<64x8xf32> to vector<64x8xbf16>
    %150 = tpu.concatenate %98, %115, %132, %149 in 1 : vector<64x8xbf16>, vector<64x8xbf16>, vector<64x8xbf16>, vector<64x8xbf16> -> vector<64x32xbf16>
    %151 = tpu.concatenate %79, %150 in 0 : vector<64x32xbf16>, vector<64x32xbf16> -> vector<128x32xbf16>
    %c0_44 = arith.constant 0 : index
    %c0_45 = arith.constant 0 : index
    %152 = vector.load %arg7[%c0_44, %c0_45] : memref<32x32xbf16, #tpu.memory_space<vmem>>, vector<32x32xbf16>
    %cst_46 = arith.constant dense<0.000000e+00> : vector<128x32xf32>
    %153 = tpu.matmul %151, %152, %cst_46 {dimension_numbers = #tpu.dot_dimension_numbers<[1], [0], [0], [1], [0, 0, 1, 1], [], []>} : vector<128x32xbf16>, vector<32x32xbf16>, vector<128x32xf32> -> vector<128x32xf32>
    %c0_47 = arith.constant 0 : index
    %c0_48 = arith.constant 0 : index
    %154 = vector.load %arg8[%c0_47, %c0_48] : memref<1x32xf32, #tpu.memory_space<vmem>>, vector<1x32xf32>
    %155 = vector.broadcast %154 : vector<1x32xf32> to vector<128x32xf32>
    %156 = arith.addf %153, %155 : vector<128x32xf32>
    %157 = vector.shape_cast %156 : vector<128x32xf32> to vector<2x64x32xf32>
    %c0_49 = arith.constant 0 : index
    %c0_50 = arith.constant 0 : index
    %c0_51 = arith.constant 0 : index
    %158 = vector.load %arg9[%c0_49, %c0_50, %c0_51] : memref<2x64x32xf32, #tpu.memory_space<vmem>>, vector<2x64x32xf32>
    tpu.vector_store %arg9[%c0_49, %c0_50, %c0_51], %157 {strides = array<i32>} : memref<2x64x32xf32, #tpu.memory_space<vmem>>, vector<2x64x32xf32>,
    return
  }
  func.func @transform_0(%arg0: i32, %arg1: i32) -> (i32, i32, i32) {
    %c0_i32 = arith.constant 0 : i32
    %c0_i32_0 = arith.constant 0 : i32
    return %arg0, %arg1, %c0_i32 : i32, i32, i32
  }
  func.func @transform_1(%arg0: i32, %arg1: i32) -> (i32, i32, i32) {
    %c0_i32 = arith.constant 0 : i32
    %c0_i32_0 = arith.constant 0 : i32
    %c0_i32_1 = arith.constant 0 : i32
    return %arg0, %c0_i32, %c0_i32_0 : i32, i32, i32
  }
  func.func @transform_2(%arg0: i32, %arg1: i32) -> (i32, i32) {
    %c0_i32 = arith.constant 0 : i32
    %c0_i32_0 = arith.constant 0 : i32
    %c0_i32_1 = arith.constant 0 : i32
    return %c0_i32, %c0_i32_0 : i32, i32
  }
  func.func @transform_3(%arg0: i32, %arg1: i32) -> (i32, i32) {
    %c0_i32 = arith.constant 0 : i32
    %c0_i32_0 = arith.constant 0 : i32
    %c0_i32_1 = arith.constant 0 : i32
    return %c0_i32, %c0_i32_0 : i32, i32
  }
  func.func @transform_4(%arg0: i32, %arg1: i32) -> (i32, i32) {
    %c0_i32 = arith.constant 0 : i32
    %c0_i32_0 = arith.constant 0 : i32
    %c0_i32_1 = arith.constant 0 : i32
    return %c0_i32, %c0_i32_0 : i32, i32
  }
  func.func @transform_5(%arg0: i32, %arg1: i32) -> (i32, i32) {
    %c0_i32 = arith.constant 0 : i32
    %c0_i32_0 = arith.constant 0 : i32
    %c0_i32_1 = arith.constant 0 : i32
    return %c0_i32, %c0_i32_0 : i32, i32
  }
  func.func @transform_6(%arg0: i32, %arg1: i32) -> (i32, i32) {
    %c0_i32 = arith.constant 0 : i32
    %c0_i32_0 = arith.constant 0 : i32
    %c0_i32_1 = arith.constant 0 : i32
    return %c0_i32, %c0_i32_0 : i32, i32
  }
  func.func @transform_7(%arg0: i32, %arg1: i32) -> (i32, i32, i32) {
    %c0_i32 = arith.constant 0 : i32
    %c0_i32_0 = arith.constant 0 : i32
    return %arg0, %arg1, %c0_i32 : i32, i32, i32
  }
}

</mosaic_0001>

<llo_original>
// kernel: tpu_custom_call.1
$region0: #{tpu_custom_call.1}
  #allocation0 [shape = 'u32[]', space=smem, size = 0x4, offset = 0x4, fixed_abs, tag = 'smem constant byte address 0x4 - core index']
  #allocation1 [shape = 'u32[72,128]{1,0:T(1,128)}', space=vmem, size = 0x9000, scoped, tag = 'internal scratch']
  #allocation2 [shape = 'bf16[128,32]{1,0:T(8,128)(2,1)}', space=vmem, size = 0x8000, scoped, tag = 'scratch operand']
  #allocation3 [shape = 'bf16[128,32]{1,0:T(8,128)(2,1)}', space=vmem, size = 0x8000, scoped, tag = 'scratch operand']
  %s0 = inlined_call_operand.vmem [shape: f32[2,64,32], index: 0, kind: input, shape index: {}]
  %s1 = inlined_call_operand.vmem [shape: f32[2,64,32], index: 1, kind: input, shape index: {}]
  %s2 = inlined_call_operand.vmem [shape: bf16[32,32], index: 2, kind: input, shape index: {}]
  %s3 = inlined_call_operand.vmem [shape: bf16[32,32], index: 3, kind: input, shape index: {}]
  %s4 = inlined_call_operand.vmem [shape: bf16[32,32], index: 4, kind: input, shape index: {}]
  %s5 = inlined_call_operand.vmem [shape: bf16[32,32], index: 5, kind: input, shape index: {}]
  %s6 = inlined_call_operand.vmem [shape: f32[1,32], index: 6, kind: input, shape index: {}]
  %s7 = inlined_call_operand.vmem [shape: f32[2,64,32], index: 7, kind: output, shape index: {}]
  %s8 = sld [smem:[#allocation0]]
  $region42: #{tpu_custom_call.1} parent=0
    _
  %s10 = ssub.s32 1, %s8
  %s11 = scalar_select 0, %s10, %s8
  // Predicated region
  $region2: #{tpu_custom_call.1} parent=0 // pred_check
    _
  $region3: #{tpu_custom_call.1} parent=0 // pred_check_branch
    %13 = sbr.rel (0) target = $region5
  $region4: #{tpu_custom_call.1} parent=0 // pred_region
    _
  $region5: #{tpu_custom_call.1} parent=0 // pred_fallthru
    _
  // Predicated region
  $region6: #{tpu_custom_call.1} parent=0 // pred_check
    _
  $region7: #{tpu_custom_call.1} parent=0 // pred_check_branch
    %15 = sbr.rel (0) target = $region9
  $region8: #{tpu_custom_call.1} parent=0 // pred_region
    _
  $region9: #{tpu_custom_call.1} parent=0 // pred_fallthru
    _
  // Predicated region
  $region10: #{tpu_custom_call.1} parent=0 // pred_check
    _
  $region11: #{tpu_custom_call.1} parent=0 // pred_check_branch
    %17 = sbr.rel (0) target = $region13
  $region12: #{tpu_custom_call.1} parent=0 // pred_region
    _
  $region13: #{tpu_custom_call.1} parent=0 // pred_fallthru
    _
  // Predicated region
  $region14: #{tpu_custom_call.1} parent=0 // pred_check
    _
  $region15: #{tpu_custom_call.1} parent=0 // pred_check_branch
    %19 = sbr.rel (0) target = $region17
  $region16: #{tpu_custom_call.1} parent=0 // pred_region
    _
  $region17: #{tpu_custom_call.1} parent=0 // pred_fallthru
    _
  // Predicated region
  $region18: #{tpu_custom_call.1} parent=0 // pred_check
    _
  $region19: #{tpu_custom_call.1} parent=0 // pred_check_branch
    %21 = sbr.rel (0) target = $region21
  $region20: #{tpu_custom_call.1} parent=0 // pred_region
    _
  $region21: #{tpu_custom_call.1} parent=0 // pred_fallthru
    _
  // Predicated region
  $region22: #{tpu_custom_call.1} parent=0 // pred_check
    _
  $region23: #{tpu_custom_call.1} parent=0 // pred_check_branch
    %23 = sbr.rel (0) target = $region25
  $region24: #{tpu_custom_call.1} parent=0 // pred_region
    _
  $region25: #{tpu_custom_call.1} parent=0 // pred_fallthru
    _
  // Predicated region
  $region26: #{tpu_custom_call.1} parent=0 // pred_check
    _
  $region27: #{tpu_custom_call.1} parent=0 // pred_check_branch
    %25 = sbr.rel (0) target = $region29
  $region28: #{tpu_custom_call.1} parent=0 // pred_region
    _
  $region29: #{tpu_custom_call.1} parent=0 // pred_fallthru
    _
  %p27 = scmp.eq.s32.totalorder 0, 0
  // Predicated region
  $region30: #{tpu_custom_call.1} parent=0 // pred_check
    %p28 = pneg %p27
  $region31: #{tpu_custom_call.1} parent=0 // pred_check_branch
    %30 = sbr.rel (%p28) target = $region33
  $region32: #{tpu_custom_call.1} parent=0 // pred_region
    %v31 = vld [vmem:[%s1] sm:$0xff]
    %v32 = vld [vmem:[%s1 + $0x8] sm:$0xff]
    %v33 = vld [vmem:[%s1 + $0x10] sm:$0xff]
    %v34 = vld [vmem:[%s1 + $0x18] sm:$0xff]
    %v35 = vld [vmem:[%s1 + $0x20] sm:$0xff]
    %v36 = vld [vmem:[%s1 + $0x28] sm:$0xff]
    %v37 = vld [vmem:[%s1 + $0x30] sm:$0xff]
    %v38 = vld [vmem:[%s1 + $0x38] sm:$0xff]
    %v39 = vld [vmem:[%s1 + $0x40] sm:$0xff]
    %v40 = vld [vmem:[%s1 + $0x48] sm:$0xff]
    %v41 = vld [vmem:[%s1 + $0x50] sm:$0xff]
    %v42 = vld [vmem:[%s1 + $0x58] sm:$0xff]
    %v43 = vld [vmem:[%s1 + $0x60] sm:$0xff]
    %v44 = vld [vmem:[%s1 + $0x68] sm:$0xff]
    %v45 = vld [vmem:[%s1 + $0x70] sm:$0xff]
    %v46 = vld [vmem:[%s1 + $0x78] sm:$0xff]
    %v47 = vpack.c.bf16 %v32, %v31
    %v48 = vpack.c.bf16 %v34, %v33
    %v49 = vpack.c.bf16 %v36, %v35
    %v50 = vpack.c.bf16 %v38, %v37
    %v51 = vpack.c.bf16 %v40, %v39
    %v52 = vpack.c.bf16 %v42, %v41
    %v53 = vpack.c.bf16 %v44, %v43
    %v54 = vpack.c.bf16 %v46, %v45
    %v55 = vld [vmem:[%s3] sm:$0xf]
    %v56 = vld [vmem:[%s3 + $0x4] sm:$0xf]
    %v57 = vld [vmem:[%s3 + $0x8] sm:$0xf]
    %v58 = vld [vmem:[%s3 + $0xc] sm:$0xf]
    %v63 = vunpack.c.l.b16 %v55
    %v64 = vunpack.c.l.b16 %v56
    %v65 = vunpack.c.l.b16 %v57
    %v66 = vunpack.c.l.b16 %v58
    %v67 = vpack.c.b16 %v64, %v63
    %v68 = vpack.c.b16 %v66, %v65
    %vm71 = vcmask 261120
    %v73 = vsel %vm71, %v47, 0
    %v76 = vsel %vm71, %v48, 0
    %v79 = vsel %vm71, %v49, 0
    %v82 = vsel %vm71, %v50, 0
    %v85 = vsel %vm71, %v51, 0
    %v88 = vsel %vm71, %v52, 0
    %v91 = vsel %vm71, %v53, 0
    %v94 = vsel %vm71, %v54, 0
    %96 = vmatpush.bf16.msra.mxu0 0
    %97 = vmatpush.bf16.msra.mxu0 0
    %98 = vmatpush.bf16.msra.mxu0 0
    %99 = vmatpush.bf16.msra.mxu0 0
    %100 = vmatpush.bf16.msra.mxu0 0
    %101 = vmatpush.bf16.msra.mxu0 0
    %102 = vmatpush.bf16.msra.mxu0 %v68
    %103 = vmatpush.bf16.msra.mxu0 %v67
    %104 = vmatmul.bf16.gmra.mxu0 %v73
    %v105 = vpop.f32.mrf.mxu0
    %v106 = vadd.f32 0.0, %v105
    %v107 = vpop.f32.mrf.mxu0
    %v108 = vadd.f32 0.0, %v107
    %109 = vmatmul.bf16.gmra.mxu0 %v76
    %v110 = vpop.f32.mrf.mxu0
    %v111 = vadd.f32 0.0, %v110
    %v112 = vpop.f32.mrf.mxu0
    %v113 = vadd.f32 0.0, %v112
    %114 = vmatmul.bf16.gmra.mxu0 %v79
    %v115 = vpop.f32.mrf.mxu0
    %v116 = vadd.f32 0.0, %v115
    %v117 = vpop.f32.mrf.mxu0
    %v118 = vadd.f32 0.0, %v117
    %119 = vmatmul.bf16.gmra.mxu0 %v82
    %v120 = vpop.f32.mrf.mxu0
    %v121 = vadd.f32 0.0, %v120
    %v122 = vpop.f32.mrf.mxu0
    %v123 = vadd.f32 0.0, %v122
    %124 = vmatmul.bf16.gmra.mxu0 %v85
    %v125 = vpop.f32.mrf.mxu0
    %v126 = vadd.f32 0.0, %v125
    %v127 = vpop.f32.mrf.mxu0
    %v128 = vadd.f32 0.0, %v127
    %129 = vmatmul.bf16.gmra.mxu0 %v88
    %v130 = vpop.f32.mrf.mxu0
    %v131 = vadd.f32 0.0, %v130
    %v132 = vpop.f32.mrf.mxu0
    %v133 = vadd.f32 0.0, %v132
    %134 = vmatmul.bf16.gmra.mxu0 %v91
    %v135 = vpop.f32.mrf.mxu0
    %v136 = vadd.f32 0.0, %v135
    %v137 = vpop.f32.mrf.mxu0
    %v138 = vadd.f32 0.0, %v137
    %139 = vmatmul.bf16.gmra.mxu0 %v94
    %v140 = vpop.f32.mrf.mxu0
    %v141 = vadd.f32 0.0, %v140
    %v142 = vpop.f32.mrf.mxu0
    %v143 = vadd.f32 0.0, %v142
    %144 = vdwg.mxu0
    %v145 = vpack.c.bf16 %v106, %v106
    %v146 = vpack.c.bf16 %v108, %v108
    %v147 = vpack.c.bf16 %v111, %v111
    %v148 = vpack.c.bf16 %v113, %v113
    %v149 = vpack.c.bf16 %v116, %v116
    %v150 = vpack.c.bf16 %v118, %v118
    %v151 = vpack.c.bf16 %v121, %v121
    %v152 = vpack.c.bf16 %v123, %v123
    %v153 = vpack.c.bf16 %v126, %v126
    %v154 = vpack.c.bf16 %v128, %v128
    %v155 = vpack.c.bf16 %v131, %v131
    %v156 = vpack.c.bf16 %v133, %v133
    %v157 = vpack.c.bf16 %v136, %v136
    %v158 = vpack.c.bf16 %v138, %v138
    %v159 = vpack.c.bf16 %v141, %v141
    %v160 = vpack.c.bf16 %v143, %v143
    %vm161 = vcmask 257024
    %162 = vst.msk [vmem:[#allocation2] sm:$0xf] %vm161, %v145
    %163 = vst.msk [vmem:[#allocation2 + $0x4] sm:$0xf] %vm161, %v146
    %164 = vst.msk [vmem:[#allocation2 + $0x8] sm:$0xf] %vm161, %v147
    %165 = vst.msk [vmem:[#allocation2 + $0xc] sm:$0xf] %vm161, %v148
    %166 = vst.msk [vmem:[#allocation2 + $0x10] sm:$0xf] %vm161, %v149
    %167 = vst.msk [vmem:[#allocation2 + $0x14] sm:$0xf] %vm161, %v150
    %168 = vst.msk [vmem:[#allocation2 + $0x18] sm:$0xf] %vm161, %v151
    %169 = vst.msk [vmem:[#allocation2 + $0x1c] sm:$0xf] %vm161, %v152
    %170 = vst.msk [vmem:[#allocation2 + $0x20] sm:$0xf] %vm161, %v153
    %171 = vst.msk [vmem:[#allocation2 + $0x24] sm:$0xf] %vm161, %v154
    %172 = vst.msk [vmem:[#allocation2 + $0x28] sm:$0xf] %vm161, %v155
    %173 = vst.msk [vmem:[#allocation2 + $0x2c] sm:$0xf] %vm161, %v156
    %174 = vst.msk [vmem:[#allocation2 + $0x30] sm:$0xf] %vm161, %v157
    %175 = vst.msk [vmem:[#allocation2 + $0x34] sm:$0xf] %vm161, %v158
    %176 = vst.msk [vmem:[#allocation2 + $0x38] sm:$0xf] %vm161, %v159
    %177 = vst.msk [vmem:[#allocation2 + $0x3c] sm:$0xf] %vm161, %v160
    %v178 = vld [vmem:[%s4] sm:$0xf]
    %v179 = vld [vmem:[%s4 + $0x4] sm:$0xf]
    %v180 = vld [vmem:[%s4 + $0x8] sm:$0xf]
    %v181 = vld [vmem:[%s4 + $0xc] sm:$0xf]
    %v186 = vunpack.c.l.b16 %v178
    %v187 = vunpack.c.l.b16 %v179
    %v188 = vunpack.c.l.b16 %v180
    %v189 = vunpack.c.l.b16 %v181
    %v190 = vpack.c.b16 %v187, %v186
    %v191 = vpack.c.b16 %v189, %v188
    %194 = vmatpush.bf16.msra.mxu0 0
    %195 = vmatpush.bf16.msra.mxu0 0
    %196 = vmatpush.bf16.msra.mxu0 0
    %197 = vmatpush.bf16.msra.mxu0 0
    %198 = vmatpush.bf16.msra.mxu0 0
    %199 = vmatpush.bf16.msra.mxu0 0
    %200 = vmatpush.bf16.msra.mxu0 %v191
    %201 = vmatpush.bf16.msra.mxu0 %v190
    %202 = vmatmul.bf16.gmra.mxu0 %v73
    %v203 = vpop.f32.mrf.mxu0
    %v204 = vadd.f32 0.0, %v203
    %v205 = vpop.f32.mrf.mxu0
    %v206 = vadd.f32 0.0, %v205
    %207 = vmatmul.bf16.gmra.mxu0 %v76
    %v208 = vpop.f32.mrf.mxu0
    %v209 = vadd.f32 0.0, %v208
    %v210 = vpop.f32.mrf.mxu0
    %v211 = vadd.f32 0.0, %v210
    %212 = vmatmul.bf16.gmra.mxu0 %v79
    %v213 = vpop.f32.mrf.mxu0
    %v214 = vadd.f32 0.0, %v213
    %v215 = vpop.f32.mrf.mxu0
    %v216 = vadd.f32 0.0, %v215
    %217 = vmatmul.bf16.gmra.mxu0 %v82
    %v218 = vpop.f32.mrf.mxu0
    %v219 = vadd.f32 0.0, %v218
    %v220 = vpop.f32.mrf.mxu0
    %v221 = vadd.f32 0.0, %v220
    %222 = vmatmul.bf16.gmra.mxu0 %v85
    %v223 = vpop.f32.mrf.mxu0
    %v224 = vadd.f32 0.0, %v223
    %v225 = vpop.f32.mrf.mxu0
    %v226 = vadd.f32 0.0, %v225
    %227 = vmatmul.bf16.gmra.mxu0 %v88
    %v228 = vpop.f32.mrf.mxu0
    %v229 = vadd.f32 0.0, %v228
    %v230 = vpop.f32.mrf.mxu0
    %v231 = vadd.f32 0.0, %v230
    %232 = vmatmul.bf16.gmra.mxu0 %v91
    %v233 = vpop.f32.mrf.mxu0
    %v234 = vadd.f32 0.0, %v233
    %v235 = vpop.f32.mrf.mxu0
    %v236 = vadd.f32 0.0, %v235
    %237 = vmatmul.bf16.gmra.mxu0 %v94
    %v238 = vpop.f32.mrf.mxu0
    %v239 = vadd.f32 0.0, %v238
    %v240 = vpop.f32.mrf.mxu0
    %v241 = vadd.f32 0.0, %v240
    %242 = vdwg.mxu0
    %v243 = vpack.c.bf16 %v204, %v204
    %v244 = vpack.c.bf16 %v206, %v206
    %v245 = vpack.c.bf16 %v209, %v209
    %v246 = vpack.c.bf16 %v211, %v211
    %v247 = vpack.c.bf16 %v214, %v214
    %v248 = vpack.c.bf16 %v216, %v216
    %v249 = vpack.c.bf16 %v219, %v219
    %v250 = vpack.c.bf16 %v221, %v221
    %v251 = vpack.c.bf16 %v224, %v224
    %v252 = vpack.c.bf16 %v226, %v226
    %v253 = vpack.c.bf16 %v229, %v229
    %v254 = vpack.c.bf16 %v231, %v231
    %v255 = vpack.c.bf16 %v234, %v234
    %v256 = vpack.c.bf16 %v236, %v236
    %v257 = vpack.c.bf16 %v239, %v239
    %v258 = vpack.c.bf16 %v241, %v241
    %259 = vst.msk [vmem:[#allocation3] sm:$0xf] %vm161, %v243
    %260 = vst.msk [vmem:[#allocation3 + $0x4] sm:$0xf] %vm161, %v244
    %261 = vst.msk [vmem:[#allocation3 + $0x8] sm:$0xf] %vm161, %v245
    %262 = vst.msk [vmem:[#allocation3 + $0xc] sm:$0xf] %vm161, %v246
    %263 = vst.msk [vmem:[#allocation3 + $0x10] sm:$0xf] %vm161, %v247
    %264 = vst.msk [vmem:[#allocation3 + $0x14] sm:$0xf] %vm161, %v248
    %265 = vst.msk [vmem:[#allocation3 + $0x18] sm:$0xf] %vm161, %v249
    %266 = vst.msk [vmem:[#allocation3 + $0x1c] sm:$0xf] %vm161, %v250
    %267 = vst.msk [vmem:[#allocation3 + $0x20] sm:$0xf] %vm161, %v251
    %268 = vst.msk [vmem:[#allocation3 + $0x24] sm:$0xf] %vm161, %v252
    %269 = vst.msk [vmem:[#allocation3 + $0x28] sm:$0xf] %vm161, %v253
    %270 = vst.msk [vmem:[#allocation3 + $0x2c] sm:$0xf] %vm161, %v254
    %271 = vst.msk [vmem:[#allocation3 + $0x30] sm:$0xf] %vm161, %v255
    %272 = vst.msk [vmem:[#allocation3 + $0x34] sm:$0xf] %vm161, %v256
    %273 = vst.msk [vmem:[#allocation3 + $0x38] sm:$0xf] %vm161, %v257
    %274 = vst.msk [vmem:[#allocation3 + $0x3c] sm:$0xf] %vm161, %v258
  $region33: #{tpu_custom_call.1} parent=0 // pred_fallthru
    _
  %v275 = vld [vmem:[%s0] sm:$0xff]
  %v276 = vld [vmem:[%s0 + $0x8] sm:$0xff]
  %v277 = vld [vmem:[%s0 + $0x10] sm:$0xff]
  %v278 = vld [vmem:[%s0 + $0x18] sm:$0xff]
  %v279 = vld [vmem:[%s0 + $0x20] sm:$0xff]
  %v280 = vld [vmem:[%s0 + $0x28] sm:$0xff]
  %v281 = vld [vmem:[%s0 + $0x30] sm:$0xff]
  %v282 = vld [vmem:[%s0 + $0x38] sm:$0xff]
  %v283 = vld [vmem:[%s0 + $0x40] sm:$0xff]
  %v284 = vld [vmem:[%s0 + $0x48] sm:$0xff]
  %v285 = vld [vmem:[%s0 + $0x50] sm:$0xff]
  %v286 = vld [vmem:[%s0 + $0x58] sm:$0xff]
  %v287 = vld [vmem:[%s0 + $0x60] sm:$0xff]
  %v288 = vld [vmem:[%s0 + $0x68] sm:$0xff]
  %v289 = vld [vmem:[%s0 + $0x70] sm:$0xff]
  %v290 = vld [vmem:[%s0 + $0x78] sm:$0xff]
  %v291 = vpack.c.bf16 %v276, %v275
  %v292 = vpack.c.bf16 %v278, %v277
  %v293 = vpack.c.bf16 %v280, %v279
  %v294 = vpack.c.bf16 %v282, %v281
  %v295 = vpack.c.bf16 %v284, %v283
  %v296 = vpack.c.bf16 %v286, %v285
  %v297 = vpack.c.bf16 %v288, %v287
  %v298 = vpack.c.bf16 %v290, %v289
  %v299 = vld [vmem:[%s2] sm:$0xf]
  %v300 = vld [vmem:[%s2 + $0x4] sm:$0xf]
  %v301 = vld [vmem:[%s2 + $0x8] sm:$0xf]
  %v302 = vld [vmem:[%s2 + $0xc] sm:$0xf]
  %v307 = vunpack.c.l.b16 %v299
  %v308 = vunpack.c.l.b16 %v300
  %v309 = vunpack.c.l.b16 %v301
  %v310 = vunpack.c.l.b16 %v302
  %v311 = vpack.c.b16 %v308, %v307
  %v312 = vpack.c.b16 %v310, %v309
  %vm315 = vcmask 261120
  %v317 = vsel %vm315, %v291, 0
  %v320 = vsel %vm315, %v292, 0
  %v323 = vsel %vm315, %v293, 0
  %v326 = vsel %vm315, %v294, 0
  %v329 = vsel %vm315, %v295, 0
  %v332 = vsel %vm315, %v296, 0
  %v335 = vsel %vm315, %v297, 0
  %v338 = vsel %vm315, %v298, 0
  %340 = vmatpush.bf16.msra.mxu0 0
  %341 = vmatpush.bf16.msra.mxu0 0
  %342 = vmatpush.bf16.msra.mxu0 0
  %343 = vmatpush.bf16.msra.mxu0 0
  %344 = vmatpush.bf16.msra.mxu0 0
  %345 = vmatpush.bf16.msra.mxu0 0
  %346 = vmatpush.bf16.msra.mxu0 %v312
  %347 = vmatpush.bf16.msra.mxu0 %v311
  %348 = vmatmul.bf16.gmra.mxu0 %v317
  %v349 = vpop.f32.mrf.mxu0
  %v350 = vadd.f32 0.0, %v349
  %v351 = vpop.f32.mrf.mxu0
  %v352 = vadd.f32 0.0, %v351
  %353 = vmatmul.bf16.gmra.mxu0 %v320
  %v354 = vpop.f32.mrf.mxu0
  %v355 = vadd.f32 0.0, %v354
  %v356 = vpop.f32.mrf.mxu0
  %v357 = vadd.f32 0.0, %v356
  %358 = vmatmul.bf16.gmra.mxu0 %v323
  %v359 = vpop.f32.mrf.mxu0
  %v360 = vadd.f32 0.0, %v359
  %v361 = vpop.f32.mrf.mxu0
  %v362 = vadd.f32 0.0, %v361
  %363 = vmatmul.bf16.gmra.mxu0 %v326
  %v364 = vpop.f32.mrf.mxu0
  %v365 = vadd.f32 0.0, %v364
  %v366 = vpop.f32.mrf.mxu0
  %v367 = vadd.f32 0.0, %v366
  %368 = vmatmul.bf16.gmra.mxu0 %v329
  %v369 = vpop.f32.mrf.mxu0
  %v370 = vadd.f32 0.0, %v369
  %v371 = vpop.f32.mrf.mxu0
  %v372 = vadd.f32 0.0, %v371
  %373 = vmatmul.bf16.gmra.mxu0 %v332
  %v374 = vpop.f32.mrf.mxu0
  %v375 = vadd.f32 0.0, %v374
  %v376 = vpop.f32.mrf.mxu0
  %v377 = vadd.f32 0.0, %v376
  %378 = vmatmul.bf16.gmra.mxu0 %v335
  %v379 = vpop.f32.mrf.mxu0
  %v380 = vadd.f32 0.0, %v379
  %v381 = vpop.f32.mrf.mxu0
  %v382 = vadd.f32 0.0, %v381
  %383 = vmatmul.bf16.gmra.mxu0 %v338
  %v384 = vpop.f32.mrf.mxu0
  %v385 = vadd.f32 0.0, %v384
  %v386 = vpop.f32.mrf.mxu0
  %v387 = vadd.f32 0.0, %v386
  %388 = vdwg.mxu0
  %v389 = vpack.c.bf16 %v350, %v350
  %v390 = vpack.c.bf16 %v352, %v352
  %v391 = vpack.c.bf16 %v355, %v355
  %v392 = vpack.c.bf16 %v357, %v357
  %v393 = vpack.c.bf16 %v360, %v360
  %v394 = vpack.c.bf16 %v362, %v362
  %v395 = vpack.c.bf16 %v365, %v365
  %v396 = vpack.c.bf16 %v367, %v367
  %v397 = vpack.c.bf16 %v370, %v370
  %v398 = vpack.c.bf16 %v372, %v372
  %v399 = vpack.c.bf16 %v375, %v375
  %v400 = vpack.c.bf16 %v377, %v377
  %v401 = vpack.c.bf16 %v380, %v380
  %v402 = vpack.c.bf16 %v382, %v382
  %v403 = vpack.c.bf16 %v385, %v385
  %v404 = vpack.c.bf16 %v387, %v387
  %v405 = vld [vmem:[#allocation2] sm:$0xf]
  %v406 = vld [vmem:[#allocation2 + $0x4] sm:$0xf]
  %v407 = vld [vmem:[#allocation2 + $0x8] sm:$0xf]
  %v408 = vld [vmem:[#allocation2 + $0xc] sm:$0xf]
  %v409 = vld [vmem:[#allocation2 + $0x10] sm:$0xf]
  %v410 = vld [vmem:[#allocation2 + $0x14] sm:$0xf]
  %v411 = vld [vmem:[#allocation2 + $0x18] sm:$0xf]
  %v412 = vld [vmem:[#allocation2 + $0x1c] sm:$0xf]
  %v413 = vld [vmem:[#allocation3] sm:$0xf]
  %v414 = vld [vmem:[#allocation3 + $0x4] sm:$0xf]
  %v415 = vld [vmem:[#allocation3 + $0x8] sm:$0xf]
  %v416 = vld [vmem:[#allocation3 + $0xc] sm:$0xf]
  %v417 = vld [vmem:[#allocation3 + $0x10] sm:$0xf]
  %v418 = vld [vmem:[#allocation3 + $0x14] sm:$0xf]
  %v419 = vld [vmem:[#allocation3 + $0x18] sm:$0xf]
  %v420 = vld [vmem:[#allocation3 + $0x1c] sm:$0xf]
  %v429 = vunpack.c.l.b16 %v389
  %v430 = vunpack.c.l.b16 %v390
  %v431 = vunpack.c.l.b16 %v391
  %v432 = vunpack.c.l.b16 %v392
  %v433 = vunpack.c.l.b16 %v393
  %v434 = vunpack.c.l.b16 %v394
  %v435 = vunpack.c.l.b16 %v395
  %v436 = vunpack.c.l.b16 %v396
  %v437 = vpack.c.b16 %v430, %v429
  %v438 = vpack.c.b16 %v432, %v431
  %v439 = vpack.c.b16 %v434, %v433
  %v440 = vpack.c.b16 %v436, %v435
  %v449 = vunpack.c.l.b16 %v405
  %v450 = vunpack.c.l.b16 %v406
  %v451 = vunpack.c.l.b16 %v407
  %v452 = vunpack.c.l.b16 %v408
  %v453 = vunpack.c.l.b16 %v409
  %v454 = vunpack.c.l.b16 %v410
  %v455 = vunpack.c.l.b16 %v411
  %v456 = vunpack.c.l.b16 %v412
  %v457 = vpack.c.b16 %v450, %v449
  %v458 = vpack.c.b16 %v452, %v451
  %v459 = vpack.c.b16 %v454, %v453
  %v460 = vpack.c.b16 %v456, %v455
  %vm461 = vcmask 64512
  %v463 = vsel %vm461, %v437, 0
  %v466 = vsel %vm461, %v438, 0
  %v469 = vsel %vm461, %v439, 0
  %v472 = vsel %vm461, %v440, 0
  %v475 = vsel %vm461, %v457, 0
  %v478 = vsel %vm461, %v458, 0
  %v481 = vsel %vm461, %v459, 0
  %v484 = vsel %vm461, %v460, 0
  %486 = vmatpush.bf16.xpose.msra.mxu0 0
  %487 = vmatpush.bf16.xpose.msra.mxu0 0
  %488 = vmatpush.bf16.xpose.msra.mxu0 0
  %489 = vmatpush.bf16.xpose.msra.mxu0 0
  %490 = vmatpush.bf16.xpose.msra.mxu0 %v484
  %491 = vmatpush.bf16.xpose.msra.mxu0 %v481
  %492 = vmatpush.bf16.xpose.msra.mxu0 %v478
  %493 = vmatpush.bf16.xpose.msra.mxu0 %v475
  %494 = vmatmul.bf16.gmra.mxu0 %v463
  %v495 = vpop.f32.mrf.mxu0
  %v496 = vadd.f32 0.0, %v495
  %v497 = vpop.f32.mrf.mxu0
  %v498 = vadd.f32 0.0, %v497
  %499 = vmatmul.bf16.gmra.mxu0 %v466
  %v500 = vpop.f32.mrf.mxu0
  %v501 = vadd.f32 0.0, %v500
  %v502 = vpop.f32.mrf.mxu0
  %v503 = vadd.f32 0.0, %v502
  %504 = vmatmul.bf16.gmra.mxu0 %v469
  %v505 = vpop.f32.mrf.mxu0
  %v506 = vadd.f32 0.0, %v505
  %v507 = vpop.f32.mrf.mxu0
  %v508 = vadd.f32 0.0, %v507
  %509 = vmatmul.bf16.gmra.mxu0 %v472
  %v510 = vpop.f32.mrf.mxu0
  %v511 = vadd.f32 0.0, %v510
  %v512 = vpop.f32.mrf.mxu0
  %v513 = vadd.f32 0.0, %v512
  %514 = vdwg.mxu0
  %vm515 = vcmask 523264
  %v516 = vsel %vm515, %v496, -inf
  %517 = vmax.xlane.f32.xlu0 %v516
  %v518 = vpop.xlane.xlu0 %517
  %v519 = vsel %vm515, %v498, -inf
  %520 = vmax.xlane.f32.xlu0 %v519
  %v521 = vpop.xlane.xlu0 %520
  %v522 = vsel %vm515, %v501, -inf
  %523 = vmax.xlane.f32.xlu0 %v522
  %v524 = vpop.xlane.xlu0 %523
  %v525 = vsel %vm515, %v503, -inf
  %526 = vmax.xlane.f32.xlu0 %v525
  %v527 = vpop.xlane.xlu0 %526
  %v528 = vsel %vm515, %v506, -inf
  %529 = vmax.xlane.f32.xlu0 %v528
  %v530 = vpop.xlane.xlu0 %529
  %v531 = vsel %vm515, %v508, -inf
  %532 = vmax.xlane.f32.xlu0 %v531
  %v533 = vpop.xlane.xlu0 %532
  %v534 = vsel %vm515, %v511, -inf
  %535 = vmax.xlane.f32.xlu0 %v534
  %v536 = vpop.xlane.xlu0 %535
  %v537 = vsel %vm515, %v513, -inf
  %538 = vmax.xlane.f32.xlu0 %v537
  %v539 = vpop.xlane.xlu0 %538
  %v540 = vsub.f32 %v496, %v518
  %v541 = vsub.f32 %v498, %v521
  %v542 = vsub.f32 %v501, %v524
  %v543 = vsub.f32 %v503, %v527
  %v544 = vsub.f32 %v506, %v530
  %v545 = vsub.f32 %v508, %v533
  %v546 = vsub.f32 %v511, %v536
  %v547 = vsub.f32 %v513, %v539
  %v548 = vmul.f32 %v540, 1.442695
  %v549 = vpow.pop %v548
  %v550 = vmul.f32 %v541, 1.442695
  %v551 = vpow.pop %v550
  %v552 = vmul.f32 %v542, 1.442695
  %v553 = vpow.pop %v552
  %v554 = vmul.f32 %v543, 1.442695
  %v555 = vpow.pop %v554
  %v556 = vmul.f32 %v544, 1.442695
  %v557 = vpow.pop %v556
  %v558 = vmul.f32 %v545, 1.442695
  %v559 = vpow.pop %v558
  %v560 = vmul.f32 %v546, 1.442695
  %v561 = vpow.pop %v560
  %v562 = vmul.f32 %v547, 1.442695
  %v563 = vpow.pop %v562
  %v564 = vsel %vm515, %v549, 0.0
  %565 = vadd.xlane.f32.xlu0 %v564
  %v566 = vpop.xlane.xlu0 %565
  %v567 = vsel %vm515, %v551, 0.0
  %568 = vadd.xlane.f32.xlu0 %v567
  %v569 = vpop.xlane.xlu0 %568
  %v570 = vsel %vm515, %v553, 0.0
  %571 = vadd.xlane.f32.xlu0 %v570
  %v572 = vpop.xlane.xlu0 %571
  %v573 = vsel %vm515, %v555, 0.0
  %574 = vadd.xlane.f32.xlu0 %v573
  %v575 = vpop.xlane.xlu0 %574
  %v576 = vsel %vm515, %v557, 0.0
  %577 = vadd.xlane.f32.xlu0 %v576
  %v578 = vpop.xlane.xlu0 %577
  %v579 = vsel %vm515, %v559, 0.0
  %580 = vadd.xlane.f32.xlu0 %v579
  %v581 = vpop.xlane.xlu0 %580
  %v582 = vsel %vm515, %v561, 0.0
  %583 = vadd.xlane.f32.xlu0 %v582
  %v584 = vpop.xlane.xlu0 %583
  %v585 = vsel %vm515, %v563, 0.0
  %586 = vadd.xlane.f32.xlu0 %v585
  %v587 = vpop.xlane.xlu0 %586
  %v588 = vpack.c.bf16 %v551, %v549
  %v589 = vpack.c.bf16 %v555, %v553
  %v590 = vpack.c.bf16 %v559, %v557
  %v591 = vpack.c.bf16 %v563, %v561
  %v600 = vunpack.c.l.b16 %v413
  %v601 = vunpack.c.l.b16 %v414
  %v602 = vunpack.c.l.b16 %v415
  %v603 = vunpack.c.l.b16 %v416
  %v604 = vunpack.c.l.b16 %v417
  %v605 = vunpack.c.l.b16 %v418
  %v606 = vunpack.c.l.b16 %v419
  %v607 = vunpack.c.l.b16 %v420
  %v608 = vpack.c.b16 %v601, %v600
  %v609 = vpack.c.b16 %v603, %v602
  %v610 = vpack.c.b16 %v605, %v604
  %v611 = vpack.c.b16 %v607, %v606
  %v617 = vsel %vm515, %v588, 0
  %v620 = vsel %vm515, %v589, 0
  %v623 = vsel %vm515, %v590, 0
  %v626 = vsel %vm515, %v591, 0
  %628 = vmatpush.bf16.msra.mxu0 0
  %629 = vmatpush.bf16.msra.mxu0 0
  %630 = vmatpush.bf16.msra.mxu0 0
  %631 = vmatpush.bf16.msra.mxu0 0
  %632 = vmatpush.bf16.msra.mxu0 %v611
  %633 = vmatpush.bf16.msra.mxu0 %v610
  %634 = vmatpush.bf16.msra.mxu0 %v609
  %635 = vmatpush.bf16.msra.mxu0 %v608
  %636 = vmatmul.bf16.gmra.mxu0 %v617
  %v637 = vpop.f32.mrf.mxu0
  %v638 = vadd.f32 0.0, %v637
  %v639 = vpop.f32.mrf.mxu0
  %v640 = vadd.f32 0.0, %v639
  %641 = vmatmul.bf16.gmra.mxu0 %v620
  %v642 = vpop.f32.mrf.mxu0
  %v643 = vadd.f32 0.0, %v642
  %v644 = vpop.f32.mrf.mxu0
  %v645 = vadd.f32 0.0, %v644
  %646 = vmatmul.bf16.gmra.mxu0 %v623
  %v647 = vpop.f32.mrf.mxu0
  %v648 = vadd.f32 0.0, %v647
  %v649 = vpop.f32.mrf.mxu0
  %v650 = vadd.f32 0.0, %v649
  %651 = vmatmul.bf16.gmra.mxu0 %v626
  %v652 = vpop.f32.mrf.mxu0
  %v653 = vadd.f32 0.0, %v652
  %v654 = vpop.f32.mrf.mxu0
  %v655 = vadd.f32 0.0, %v654
  %656 = vdwg.mxu0
  %v657 = vrcp.pop %v566
  %v658 = vrcp.pop %v569
  %v659 = vrcp.pop %v572
  %v660 = vrcp.pop %v575
  %v661 = vrcp.pop %v578
  %v662 = vrcp.pop %v581
  %v663 = vrcp.pop %v584
  %v664 = vrcp.pop %v587
  %v665 = vmul.f32 %v638, %v657
  %v666 = vmul.f32 %v640, %v658
  %v667 = vmul.f32 %v643, %v659
  %v668 = vmul.f32 %v645, %v660
  %v669 = vmul.f32 %v648, %v661
  %v670 = vmul.f32 %v650, %v662
  %v671 = vmul.f32 %v653, %v663
  %v672 = vmul.f32 %v655, %v664
  %v673 = vpack.c.bf16 %v665, %v665
  %v674 = vpack.c.bf16 %v666, %v666
  %v675 = vpack.c.bf16 %v667, %v667
  %v676 = vpack.c.bf16 %v668, %v668
  %v677 = vpack.c.bf16 %v669, %v669
  %v678 = vpack.c.bf16 %v670, %v670
  %v679 = vpack.c.bf16 %v671, %v671
  %v680 = vpack.c.bf16 %v672, %v672
  %681 = vrot.lane.b32.xlu0 %v437, 120
  %v682 = vpop.permute.xlu0 %681
  %683 = vrot.lane.b32.xlu0 %v438, 120
  %v684 = vpop.permute.xlu0 %683
  %685 = vrot.lane.b32.xlu0 %v439, 120
  %v686 = vpop.permute.xlu0 %685
  %687 = vrot.lane.b32.xlu0 %v440, 120
  %v688 = vpop.permute.xlu0 %687
  %689 = vrot.lane.b32.xlu0 %v457, 120
  %v690 = vpop.permute.xlu0 %689
  %691 = vrot.lane.b32.xlu0 %v458, 120
  %v692 = vpop.permute.xlu0 %691
  %693 = vrot.lane.b32.xlu0 %v459, 120
  %v694 = vpop.permute.xlu0 %693
  %695 = vrot.lane.b32.xlu0 %v460, 120
  %v696 = vpop.permute.xlu0 %695
  %v698 = vsel %vm461, %v682, 0
  %v701 = vsel %vm461, %v684, 0
  %v704 = vsel %vm461, %v686, 0
  %v707 = vsel %vm461, %v688, 0
  %v710 = vsel %vm461, %v690, 0
  %v713 = vsel %vm461, %v692, 0
  %v716 = vsel %vm461, %v694, 0
  %v719 = vsel %vm461, %v696, 0
  %721 = vmatpush.bf16.xpose.msra.mxu0 0
  %722 = vmatpush.bf16.xpose.msra.mxu0 0
  %723 = vmatpush.bf16.xpose.msra.mxu0 0
  %724 = vmatpush.bf16.xpose.msra.mxu0 0
  %725 = vmatpush.bf16.xpose.msra.mxu0 %v719
  %726 = vmatpush.bf16.xpose.msra.mxu0 %v716
  %727 = vmatpush.bf16.xpose.msra.mxu0 %v713
  %728 = vmatpush.bf16.xpose.msra.mxu0 %v710
  %729 = vmatmul.bf16.gmra.mxu0 %v698
  %v730 = vpop.f32.mrf.mxu0
  %v731 = vadd.f32 0.0, %v730
  %v732 = vpop.f32.mrf.mxu0
  %v733 = vadd.f32 0.0, %v732
  %734 = vmatmul.bf16.gmra.mxu0 %v701
  %v735 = vpop.f32.mrf.mxu0
  %v736 = vadd.f32 0.0, %v735
  %v737 = vpop.f32.mrf.mxu0
  %v738 = vadd.f32 0.0, %v737
  %739 = vmatmul.bf16.gmra.mxu0 %v704
  %v740 = vpop.f32.mrf.mxu0
  %v741 = vadd.f32 0.0, %v740
  %v742 = vpop.f32.mrf.mxu0
  %v743 = vadd.f32 0.0, %v742
  %744 = vmatmul.bf16.gmra.mxu0 %v707
  %v745 = vpop.f32.mrf.mxu0
  %v746 = vadd.f32 0.0, %v745
  %v747 = vpop.f32.mrf.mxu0
  %v748 = vadd.f32 0.0, %v747
  %749 = vdwg.mxu0
  %v750 = vsel %vm515, %v731, -inf
  %751 = vmax.xlane.f32.xlu0 %v750
  %v752 = vpop.xlane.xlu0 %751
  %v753 = vsel %vm515, %v733, -inf
  %754 = vmax.xlane.f32.xlu0 %v753
  %v755 = vpop.xlane.xlu0 %754
  %v756 = vsel %vm515, %v736, -inf
  %757 = vmax.xlane.f32.xlu0 %v756
  %v758 = vpop.xlane.xlu0 %757
  %v759 = vsel %vm515, %v738, -inf
  %760 = vmax.xlane.f32.xlu0 %v759
  %v761 = vpop.xlane.xlu0 %760
  %v762 = vsel %vm515, %v741, -inf
  %763 = vmax.xlane.f32.xlu0 %v762
  %v764 = vpop.xlane.xlu0 %763
  %v765 = vsel %vm515, %v743, -inf
  %766 = vmax.xlane.f32.xlu0 %v765
  %v767 = vpop.xlane.xlu0 %766
  %v768 = vsel %vm515, %v746, -inf
  %769 = vmax.xlane.f32.xlu0 %v768
  %v770 = vpop.xlane.xlu0 %769
  %v771 = vsel %vm515, %v748, -inf
  %772 = vmax.xlane.f32.xlu0 %v771
  %v773 = vpop.xlane.xlu0 %772
  %v774 = vsub.f32 %v731, %v752
  %v775 = vsub.f32 %v733, %v755
  %v776 = vsub.f32 %v736, %v758
  %v777 = vsub.f32 %v738, %v761
  %v778 = vsub.f32 %v741, %v764
  %v779 = vsub.f32 %v743, %v767
  %v780 = vsub.f32 %v746, %v770
  %v781 = vsub.f32 %v748, %v773
  %v782 = vmul.f32 %v774, 1.442695
  %v783 = vpow.pop %v782
  %v784 = vmul.f32 %v775, 1.442695
  %v785 = vpow.pop %v784
  %v786 = vmul.f32 %v776, 1.442695
  %v787 = vpow.pop %v786
  %v788 = vmul.f32 %v777, 1.442695
  %v789 = vpow.pop %v788
  %v790 = vmul.f32 %v778, 1.442695
  %v791 = vpow.pop %v790
  %v792 = vmul.f32 %v779, 1.442695
  %v793 = vpow.pop %v792
  %v794 = vmul.f32 %v780, 1.442695
  %v795 = vpow.pop %v794
  %v796 = vmul.f32 %v781, 1.442695
  %v797 = vpow.pop %v796
  %v798 = vsel %vm515, %v783, 0.0
  %799 = vadd.xlane.f32.xlu0 %v798
  %v800 = vpop.xlane.xlu0 %799
  %v801 = vsel %vm515, %v785, 0.0
  %802 = vadd.xlane.f32.xlu0 %v801
  %v803 = vpop.xlane.xlu0 %802
  %v804 = vsel %vm515, %v787, 0.0
  %805 = vadd.xlane.f32.xlu0 %v804
  %v806 = vpop.xlane.xlu0 %805
  %v807 = vsel %vm515, %v789, 0.0
  %808 = vadd.xlane.f32.xlu0 %v807
  %v809 = vpop.xlane.xlu0 %808
  %v810 = vsel %vm515, %v791, 0.0
  %811 = vadd.xlane.f32.xlu0 %v810
  %v812 = vpop.xlane.xlu0 %811
  %v813 = vsel %vm515, %v793, 0.0
  %814 = vadd.xlane.f32.xlu0 %v813
  %v815 = vpop.xlane.xlu0 %814
  %v816 = vsel %vm515, %v795, 0.0
  %817 = vadd.xlane.f32.xlu0 %v816
  %v818 = vpop.xlane.xlu0 %817
  %v819 = vsel %vm515, %v797, 0.0
  %820 = vadd.xlane.f32.xlu0 %v819
  %v821 = vpop.xlane.xlu0 %820
  %v822 = vpack.c.bf16 %v785, %v783
  %v823 = vpack.c.bf16 %v789, %v787
  %v824 = vpack.c.bf16 %v793, %v791
  %v825 = vpack.c.bf16 %v797, %v795
  %826 = vrot.lane.b32.xlu0 %v608, 120
  %v827 = vpop.permute.xlu0 %826
  %828 = vrot.lane.b32.xlu0 %v609, 120
  %v829 = vpop.permute.xlu0 %828
  %830 = vrot.lane.b32.xlu0 %v610, 120
  %v831 = vpop.permute.xlu0 %830
  %832 = vrot.lane.b32.xlu0 %v611, 120
  %v833 = vpop.permute.xlu0 %832
  %v839 = vsel %vm515, %v822, 0
  %v842 = vsel %vm515, %v823, 0
  %v845 = vsel %vm515, %v824, 0
  %v848 = vsel %vm515, %v825, 0
  %850 = vmatpush.bf16.msra.mxu0 0
  %851 = vmatpush.bf16.msra.mxu0 0
  %852 = vmatpush.bf16.msra.mxu0 0
  %853 = vmatpush.bf16.msra.mxu0 0
  %854 = vmatpush.bf16.msra.mxu0 %v833
  %855 = vmatpush.bf16.msra.mxu0 %v831
  %856 = vmatpush.bf16.msra.mxu0 %v829
  %857 = vmatpush.bf16.msra.mxu0 %v827
  %858 = vmatmul.bf16.gmra.mxu0 %v839
  %v859 = vpop.f32.mrf.mxu0
  %v860 = vadd.f32 0.0, %v859
  %v861 = vpop.f32.mrf.mxu0
  %v862 = vadd.f32 0.0, %v861
  %863 = vmatmul.bf16.gmra.mxu0 %v842
  %v864 = vpop.f32.mrf.mxu0
  %v865 = vadd.f32 0.0, %v864
  %v866 = vpop.f32.mrf.mxu0
  %v867 = vadd.f32 0.0, %v866
  %868 = vmatmul.bf16.gmra.mxu0 %v845
  %v869 = vpop.f32.mrf.mxu0
  %v870 = vadd.f32 0.0, %v869
  %v871 = vpop.f32.mrf.mxu0
  %v872 = vadd.f32 0.0, %v871
  %873 = vmatmul.bf16.gmra.mxu0 %v848
  %v874 = vpop.f32.mrf.mxu0
  %v875 = vadd.f32 0.0, %v874
  %v876 = vpop.f32.mrf.mxu0
  %v877 = vadd.f32 0.0, %v876
  %878 = vdwg.mxu0
  %v879 = vrcp.pop %v800
  %v880 = vrcp.pop %v803
  %v881 = vrcp.pop %v806
  %v882 = vrcp.pop %v809
  %v883 = vrcp.pop %v812
  %v884 = vrcp.pop %v815
  %v885 = vrcp.pop %v818
  %v886 = vrcp.pop %v821
  %v887 = vmul.f32 %v860, %v879
  %v888 = vmul.f32 %v862, %v880
  %v889 = vmul.f32 %v865, %v881
  %v890 = vmul.f32 %v867, %v882
  %v891 = vmul.f32 %v870, %v883
  %v892 = vmul.f32 %v872, %v884
  %v893 = vmul.f32 %v875, %v885
  %v894 = vmul.f32 %v877, %v886
  %v895 = vpack.c.bf16 %v887, %v887
  %v896 = vpack.c.bf16 %v888, %v888
  %v897 = vpack.c.bf16 %v889, %v889
  %v898 = vpack.c.bf16 %v890, %v890
  %v899 = vpack.c.bf16 %v891, %v891
  %v900 = vpack.c.bf16 %v892, %v892
  %v901 = vpack.c.bf16 %v893, %v893
  %v902 = vpack.c.bf16 %v894, %v894
  %903 = vrot.lane.b32.xlu0 %v437, 112
  %v904 = vpop.permute.xlu0 %903
  %905 = vrot.lane.b32.xlu0 %v438, 112
  %v906 = vpop.permute.xlu0 %905
  %907 = vrot.lane.b32.xlu0 %v439, 112
  %v908 = vpop.permute.xlu0 %907
  %909 = vrot.lane.b32.xlu0 %v440, 112
  %v910 = vpop.permute.xlu0 %909
  %911 = vrot.lane.b32.xlu0 %v457, 112
  %v912 = vpop.permute.xlu0 %911
  %913 = vrot.lane.b32.xlu0 %v458, 112
  %v914 = vpop.permute.xlu0 %913
  %915 = vrot.lane.b32.xlu0 %v459, 112
  %v916 = vpop.permute.xlu0 %915
  %917 = vrot.lane.b32.xlu0 %v460, 112
  %v918 = vpop.permute.xlu0 %917
  %v920 = vsel %vm461, %v904, 0
  %v923 = vsel %vm461, %v906, 0
  %v926 = vsel %vm461, %v908, 0
  %v929 = vsel %vm461, %v910, 0
  %v932 = vsel %vm461, %v912, 0
  %v935 = vsel %vm461, %v914, 0
  %v938 = vsel %vm461, %v916, 0
  %v941 = vsel %vm461, %v918, 0
  %943 = vmatpush.bf16.xpose.msra.mxu0 0
  %944 = vmatpush.bf16.xpose.msra.mxu0 0
  %945 = vmatpush.bf16.xpose.msra.mxu0 0
  %946 = vmatpush.bf16.xpose.msra.mxu0 0
  %947 = vmatpush.bf16.xpose.msra.mxu0 %v941
  %948 = vmatpush.bf16.xpose.msra.mxu0 %v938
  %949 = vmatpush.bf16.xpose.msra.mxu0 %v935
  %950 = vmatpush.bf16.xpose.msra.mxu0 %v932
  %951 = vmatmul.bf16.gmra.mxu0 %v920
  %v952 = vpop.f32.mrf.mxu0
  %v953 = vadd.f32 0.0, %v952
  %v954 = vpop.f32.mrf.mxu0
  %v955 = vadd.f32 0.0, %v954
  %956 = vmatmul.bf16.gmra.mxu0 %v923
  %v957 = vpop.f32.mrf.mxu0
  %v958 = vadd.f32 0.0, %v957
  %v959 = vpop.f32.mrf.mxu0
  %v960 = vadd.f32 0.0, %v959
  %961 = vmatmul.bf16.gmra.mxu0 %v926
  %v962 = vpop.f32.mrf.mxu0
  %v963 = vadd.f32 0.0, %v962
  %v964 = vpop.f32.mrf.mxu0
  %v965 = vadd.f32 0.0, %v964
  %966 = vmatmul.bf16.gmra.mxu0 %v929
  %v967 = vpop.f32.mrf.mxu0
  %v968 = vadd.f32 0.0, %v967
  %v969 = vpop.f32.mrf.mxu0
  %v970 = vadd.f32 0.0, %v969
  %971 = vdwg.mxu0
  %v972 = vsel %vm515, %v953, -inf
  %973 = vmax.xlane.f32.xlu0 %v972
  %v974 = vpop.xlane.xlu0 %973
  %v975 = vsel %vm515, %v955, -inf
  %976 = vmax.xlane.f32.xlu0 %v975
  %v977 = vpop.xlane.xlu0 %976
  %v978 = vsel %vm515, %v958, -inf
  %979 = vmax.xlane.f32.xlu0 %v978
  %v980 = vpop.xlane.xlu0 %979
  %v981 = vsel %vm515, %v960, -inf
  %982 = vmax.xlane.f32.xlu0 %v981
  %v983 = vpop.xlane.xlu0 %982
  %v984 = vsel %vm515, %v963, -inf
  %985 = vmax.xlane.f32.xlu0 %v984
  %v986 = vpop.xlane.xlu0 %985
  %v987 = vsel %vm515, %v965, -inf
  %988 = vmax.xlane.f32.xlu0 %v987
  %v989 = vpop.xlane.xlu0 %988
  %v990 = vsel %vm515, %v968, -inf
  %991 = vmax.xlane.f32.xlu0 %v990
  %v992 = vpop.xlane.xlu0 %991
  %v993 = vsel %vm515, %v970, -inf
  %994 = vmax.xlane.f32.xlu0 %v993
  %v995 = vpop.xlane.xlu0 %994
  %v996 = vsub.f32 %v953, %v974
  %v997 = vsub.f32 %v955, %v977
  %v998 = vsub.f32 %v958, %v980
  %v999 = vsub.f32 %v960, %v983
  %v1000 = vsub.f32 %v963, %v986
  %v1001 = vsub.f32 %v965, %v989
  %v1002 = vsub.f32 %v968, %v992
  %v1003 = vsub.f32 %v970, %v995
  %v1004 = vmul.f32 %v996, 1.442695
  %v1005 = vpow.pop %v1004
  %v1006 = vmul.f32 %v997, 1.442695
  %v1007 = vpow.pop %v1006
  %v1008 = vmul.f32 %v998, 1.442695
  %v1009 = vpow.pop %v1008
  %v1010 = vmul.f32 %v999, 1.442695
  %v1011 = vpow.pop %v1010
  %v1012 = vmul.f32 %v1000, 1.442695
  %v1013 = vpow.pop %v1012
  %v1014 = vmul.f32 %v1001, 1.442695
  %v1015 = vpow.pop %v1014
  %v1016 = vmul.f32 %v1002, 1.442695
  %v1017 = vpow.pop %v1016
  %v1018 = vmul.f32 %v1003, 1.442695
  %v1019 = vpow.pop %v1018
  %v1020 = vsel %vm515, %v1005, 0.0
  %1021 = vadd.xlane.f32.xlu0 %v1020
  %v1022 = vpop.xlane.xlu0 %1021
  %v1023 = vsel %vm515, %v1007, 0.0
  %1024 = vadd.xlane.f32.xlu0 %v1023
  %v1025 = vpop.xlane.xlu0 %1024
  %v1026 = vsel %vm515, %v1009, 0.0
  %1027 = vadd.xlane.f32.xlu0 %v1026
  %v1028 = vpop.xlane.xlu0 %1027
  %v1029 = vsel %vm515, %v1011, 0.0
  %1030 = vadd.xlane.f32.xlu0 %v1029
  %v1031 = vpop.xlane.xlu0 %1030
  %v1032 = vsel %vm515, %v1013, 0.0
  %1033 = vadd.xlane.f32.xlu0 %v1032
  %v1034 = vpop.xlane.xlu0 %1033
  %v1035 = vsel %vm515, %v1015, 0.0
  %1036 = vadd.xlane.f32.xlu0 %v1035
  %v1037 = vpop.xlane.xlu0 %1036
  %v1038 = vsel %vm515, %v1017, 0.0
  %1039 = vadd.xlane.f32.xlu0 %v1038
  %v1040 = vpop.xlane.xlu0 %1039
  %v1041 = vsel %vm515, %v1019, 0.0
  %1042 = vadd.xlane.f32.xlu0 %v1041
  %v1043 = vpop.xlane.xlu0 %1042
  %v1044 = vpack.c.bf16 %v1007, %v1005
  %v1045 = vpack.c.bf16 %v1011, %v1009
  %v1046 = vpack.c.bf16 %v1015, %v1013
  %v1047 = vpack.c.bf16 %v1019, %v1017
  %1048 = vrot.lane.b32.xlu0 %v608, 112
  %v1049 = vpop.permute.xlu0 %1048
  %1050 = vrot.lane.b32.xlu0 %v609, 112
  %v1051 = vpop.permute.xlu0 %1050
  %1052 = vrot.lane.b32.xlu0 %v610, 112
  %v1053 = vpop.permute.xlu0 %1052
  %1054 = vrot.lane.b32.xlu0 %v611, 112
  %v1055 = vpop.permute.xlu0 %1054
  %v1061 = vsel %vm515, %v1044, 0
  %v1064 = vsel %vm515, %v1045, 0
  %v1067 = vsel %vm515, %v1046, 0
  %v1070 = vsel %vm515, %v1047, 0
  %1072 = vmatpush.bf16.msra.mxu0 0
  %1073 = vmatpush.bf16.msra.mxu0 0
  %1074 = vmatpush.bf16.msra.mxu0 0
  %1075 = vmatpush.bf16.msra.mxu0 0
  %1076 = vmatpush.bf16.msra.mxu0 %v1055
  %1077 = vmatpush.bf16.msra.mxu0 %v1053
  %1078 = vmatpush.bf16.msra.mxu0 %v1051
  %1079 = vmatpush.bf16.msra.mxu0 %v1049
  %1080 = vmatmul.bf16.gmra.mxu0 %v1061
  %v1081 = vpop.f32.mrf.mxu0
  %v1082 = vadd.f32 0.0, %v1081
  %v1083 = vpop.f32.mrf.mxu0
  %v1084 = vadd.f32 0.0, %v1083
  %1085 = vmatmul.bf16.gmra.mxu0 %v1064
  %v1086 = vpop.f32.mrf.mxu0
  %v1087 = vadd.f32 0.0, %v1086
  %v1088 = vpop.f32.mrf.mxu0
  %v1089 = vadd.f32 0.0, %v1088
  %1090 = vmatmul.bf16.gmra.mxu0 %v1067
  %v1091 = vpop.f32.mrf.mxu0
  %v1092 = vadd.f32 0.0, %v1091
  %v1093 = vpop.f32.mrf.mxu0
  %v1094 = vadd.f32 0.0, %v1093
  %1095 = vmatmul.bf16.gmra.mxu0 %v1070
  %v1096 = vpop.f32.mrf.mxu0
  %v1097 = vadd.f32 0.0, %v1096
  %v1098 = vpop.f32.mrf.mxu0
  %v1099 = vadd.f32 0.0, %v1098
  %1100 = vdwg.mxu0
  %v1101 = vrcp.pop %v1022
  %v1102 = vrcp.pop %v1025
  %v1103 = vrcp.pop %v1028
  %v1104 = vrcp.pop %v1031
  %v1105 = vrcp.pop %v1034
  %v1106 = vrcp.pop %v1037
  %v1107 = vrcp.pop %v1040
  %v1108 = vrcp.pop %v1043
  %v1109 = vmul.f32 %v1082, %v1101
  %v1110 = vmul.f32 %v1084, %v1102
  %v1111 = vmul.f32 %v1087, %v1103
  %v1112 = vmul.f32 %v1089, %v1104
  %v1113 = vmul.f32 %v1092, %v1105
  %v1114 = vmul.f32 %v1094, %v1106
  %v1115 = vmul.f32 %v1097, %v1107
  %v1116 = vmul.f32 %v1099, %v1108
  %v1117 = vpack.c.bf16 %v1109, %v1109
  %v1118 = vpack.c.bf16 %v1110, %v1110
  %v1119 = vpack.c.bf16 %v1111, %v1111
  %v1120 = vpack.c.bf16 %v1112, %v1112
  %v1121 = vpack.c.bf16 %v1113, %v1113
  %v1122 = vpack.c.bf16 %v1114, %v1114
  %v1123 = vpack.c.bf16 %v1115, %v1115
  %v1124 = vpack.c.bf16 %v1116, %v1116
  %1125 = vrot.lane.b32.xlu0 %v437, 104
  %v1126 = vpop.permute.xlu0 %1125
  %1127 = vrot.lane.b32.xlu0 %v438, 104
  %v1128 = vpop.permute.xlu0 %1127
  %1129 = vrot.lane.b32.xlu0 %v439, 104
  %v1130 = vpop.permute.xlu0 %1129
  %1131 = vrot.lane.b32.xlu0 %v440, 104
  %v1132 = vpop.permute.xlu0 %1131
  %1133 = vrot.lane.b32.xlu0 %v457, 104
  %v1134 = vpop.permute.xlu0 %1133
  %1135 = vrot.lane.b32.xlu0 %v458, 104
  %v1136 = vpop.permute.xlu0 %1135
  %1137 = vrot.lane.b32.xlu0 %v459, 104
  %v1138 = vpop.permute.xlu0 %1137
  %1139 = vrot.lane.b32.xlu0 %v460, 104
  %v1140 = vpop.permute.xlu0 %1139
  %v1142 = vsel %vm461, %v1126, 0
  %v1145 = vsel %vm461, %v1128, 0
  %v1148 = vsel %vm461, %v1130, 0
  %v1151 = vsel %vm461, %v1132, 0
  %v1154 = vsel %vm461, %v1134, 0
  %v1157 = vsel %vm461, %v1136, 0
  %v1160 = vsel %vm461, %v1138, 0
  %v1163 = vsel %vm461, %v1140, 0
  %1165 = vmatpush.bf16.xpose.msra.mxu0 0
  %1166 = vmatpush.bf16.xpose.msra.mxu0 0
  %1167 = vmatpush.bf16.xpose.msra.mxu0 0
  %1168 = vmatpush.bf16.xpose.msra.mxu0 0
  %1169 = vmatpush.bf16.xpose.msra.mxu0 %v1163
  %1170 = vmatpush.bf16.xpose.msra.mxu0 %v1160
  %1171 = vmatpush.bf16.xpose.msra.mxu0 %v1157
  %1172 = vmatpush.bf16.xpose.msra.mxu0 %v1154
  %1173 = vmatmul.bf16.gmra.mxu0 %v1142
  %v1174 = vpop.f32.mrf.mxu0
  %v1175 = vadd.f32 0.0, %v1174
  %v1176 = vpop.f32.mrf.mxu0
  %v1177 = vadd.f32 0.0, %v1176
  %1178 = vmatmul.bf16.gmra.mxu0 %v1145
  %v1179 = vpop.f32.mrf.mxu0
  %v1180 = vadd.f32 0.0, %v1179
  %v1181 = vpop.f32.mrf.mxu0
  %v1182 = vadd.f32 0.0, %v1181
  %1183 = vmatmul.bf16.gmra.mxu0 %v1148
  %v1184 = vpop.f32.mrf.mxu0
  %v1185 = vadd.f32 0.0, %v1184
  %v1186 = vpop.f32.mrf.mxu0
  %v1187 = vadd.f32 0.0, %v1186
  %1188 = vmatmul.bf16.gmra.mxu0 %v1151
  %v1189 = vpop.f32.mrf.mxu0
  %v1190 = vadd.f32 0.0, %v1189
  %v1191 = vpop.f32.mrf.mxu0
  %v1192 = vadd.f32 0.0, %v1191
  %1193 = vdwg.mxu0
  %v1194 = vsel %vm515, %v1175, -inf
  %1195 = vmax.xlane.f32.xlu0 %v1194
  %v1196 = vpop.xlane.xlu0 %1195
  %v1197 = vsel %vm515, %v1177, -inf
  %1198 = vmax.xlane.f32.xlu0 %v1197
  %v1199 = vpop.xlane.xlu0 %1198
  %v1200 = vsel %vm515, %v1180, -inf
  %1201 = vmax.xlane.f32.xlu0 %v1200
  %v1202 = vpop.xlane.xlu0 %1201
  %v1203 = vsel %vm515, %v1182, -inf
  %1204 = vmax.xlane.f32.xlu0 %v1203
  %v1205 = vpop.xlane.xlu0 %1204
  %v1206 = vsel %vm515, %v1185, -inf
  %1207 = vmax.xlane.f32.xlu0 %v1206
  %v1208 = vpop.xlane.xlu0 %1207
  %v1209 = vsel %vm515, %v1187, -inf
  %1210 = vmax.xlane.f32.xlu0 %v1209
  %v1211 = vpop.xlane.xlu0 %1210
  %v1212 = vsel %vm515, %v1190, -inf
  %1213 = vmax.xlane.f32.xlu0 %v1212
  %v1214 = vpop.xlane.xlu0 %1213
  %v1215 = vsel %vm515, %v1192, -inf
  %1216 = vmax.xlane.f32.xlu0 %v1215
  %v1217 = vpop.xlane.xlu0 %1216
  %v1218 = vsub.f32 %v1175, %v1196
  %v1219 = vsub.f32 %v1177, %v1199
  %v1220 = vsub.f32 %v1180, %v1202
  %v1221 = vsub.f32 %v1182, %v1205
  %v1222 = vsub.f32 %v1185, %v1208
  %v1223 = vsub.f32 %v1187, %v1211
  %v1224 = vsub.f32 %v1190, %v1214
  %v1225 = vsub.f32 %v1192, %v1217
  %v1226 = vmul.f32 %v1218, 1.442695
  %v1227 = vpow.pop %v1226
  %v1228 = vmul.f32 %v1219, 1.442695
  %v1229 = vpow.pop %v1228
  %v1230 = vmul.f32 %v1220, 1.442695
  %v1231 = vpow.pop %v1230
  %v1232 = vmul.f32 %v1221, 1.442695
  %v1233 = vpow.pop %v1232
  %v1234 = vmul.f32 %v1222, 1.442695
  %v1235 = vpow.pop %v1234
  %v1236 = vmul.f32 %v1223, 1.442695
  %v1237 = vpow.pop %v1236
  %v1238 = vmul.f32 %v1224, 1.442695
  %v1239 = vpow.pop %v1238
  %v1240 = vmul.f32 %v1225, 1.442695
  %v1241 = vpow.pop %v1240
  %v1242 = vsel %vm515, %v1227, 0.0
  %1243 = vadd.xlane.f32.xlu0 %v1242
  %v1244 = vpop.xlane.xlu0 %1243
  %v1245 = vsel %vm515, %v1229, 0.0
  %1246 = vadd.xlane.f32.xlu0 %v1245
  %v1247 = vpop.xlane.xlu0 %1246
  %v1248 = vsel %vm515, %v1231, 0.0
  %1249 = vadd.xlane.f32.xlu0 %v1248
  %v1250 = vpop.xlane.xlu0 %1249
  %v1251 = vsel %vm515, %v1233, 0.0
  %1252 = vadd.xlane.f32.xlu0 %v1251
  %v1253 = vpop.xlane.xlu0 %1252
  %v1254 = vsel %vm515, %v1235, 0.0
  %1255 = vadd.xlane.f32.xlu0 %v1254
  %v1256 = vpop.xlane.xlu0 %1255
  %v1257 = vsel %vm515, %v1237, 0.0
  %1258 = vadd.xlane.f32.xlu0 %v1257
  %v1259 = vpop.xlane.xlu0 %1258
  %v1260 = vsel %vm515, %v1239, 0.0
  %1261 = vadd.xlane.f32.xlu0 %v1260
  %v1262 = vpop.xlane.xlu0 %1261
  %v1263 = vsel %vm515, %v1241, 0.0
  %1264 = vadd.xlane.f32.xlu0 %v1263
  %v1265 = vpop.xlane.xlu0 %1264
  %v1266 = vpack.c.bf16 %v1229, %v1227
  %v1267 = vpack.c.bf16 %v1233, %v1231
  %v1268 = vpack.c.bf16 %v1237, %v1235
  %v1269 = vpack.c.bf16 %v1241, %v1239
  %1270 = vrot.lane.b32.xlu0 %v608, 104
  %v1271 = vpop.permute.xlu0 %1270
  %1272 = vrot.lane.b32.xlu0 %v609, 104
  %v1273 = vpop.permute.xlu0 %1272
  %1274 = vrot.lane.b32.xlu0 %v610, 104
  %v1275 = vpop.permute.xlu0 %1274
  %1276 = vrot.lane.b32.xlu0 %v611, 104
  %v1277 = vpop.permute.xlu0 %1276
  %v1283 = vsel %vm515, %v1266, 0
  %v1286 = vsel %vm515, %v1267, 0
  %v1289 = vsel %vm515, %v1268, 0
  %v1292 = vsel %vm515, %v1269, 0
  %1294 = vmatpush.bf16.msra.mxu0 0
  %1295 = vmatpush.bf16.msra.mxu0 0
  %1296 = vmatpush.bf16.msra.mxu0 0
  %1297 = vmatpush.bf16.msra.mxu0 0
  %1298 = vmatpush.bf16.msra.mxu0 %v1277
  %1299 = vmatpush.bf16.msra.mxu0 %v1275
  %1300 = vmatpush.bf16.msra.mxu0 %v1273
  %1301 = vmatpush.bf16.msra.mxu0 %v1271
  %1302 = vmatmul.bf16.gmra.mxu0 %v1283
  %v1303 = vpop.f32.mrf.mxu0
  %v1304 = vadd.f32 0.0, %v1303
  %v1305 = vpop.f32.mrf.mxu0
  %v1306 = vadd.f32 0.0, %v1305
  %1307 = vmatmul.bf16.gmra.mxu0 %v1286
  %v1308 = vpop.f32.mrf.mxu0
  %v1309 = vadd.f32 0.0, %v1308
  %v1310 = vpop.f32.mrf.mxu0
  %v1311 = vadd.f32 0.0, %v1310
  %1312 = vmatmul.bf16.gmra.mxu0 %v1289
  %v1313 = vpop.f32.mrf.mxu0
  %v1314 = vadd.f32 0.0, %v1313
  %v1315 = vpop.f32.mrf.mxu0
  %v1316 = vadd.f32 0.0, %v1315
  %1317 = vmatmul.bf16.gmra.mxu0 %v1292
  %v1318 = vpop.f32.mrf.mxu0
  %v1319 = vadd.f32 0.0, %v1318
  %v1320 = vpop.f32.mrf.mxu0
  %v1321 = vadd.f32 0.0, %v1320
  %1322 = vdwg.mxu0
  %v1323 = vrcp.pop %v1244
  %v1324 = vrcp.pop %v1247
  %v1325 = vrcp.pop %v1250
  %v1326 = vrcp.pop %v1253
  %v1327 = vrcp.pop %v1256
  %v1328 = vrcp.pop %v1259
  %v1329 = vrcp.pop %v1262
  %v1330 = vrcp.pop %v1265
  %v1331 = vmul.f32 %v1304, %v1323
  %v1332 = vmul.f32 %v1306, %v1324
  %v1333 = vmul.f32 %v1309, %v1325
  %v1334 = vmul.f32 %v1311, %v1326
  %v1335 = vmul.f32 %v1314, %v1327
  %v1336 = vmul.f32 %v1316, %v1328
  %v1337 = vmul.f32 %v1319, %v1329
  %v1338 = vmul.f32 %v1321, %v1330
  %v1339 = vpack.c.bf16 %v1331, %v1331
  %v1340 = vpack.c.bf16 %v1332, %v1332
  %v1341 = vpack.c.bf16 %v1333, %v1333
  %v1342 = vpack.c.bf16 %v1334, %v1334
  %v1343 = vpack.c.bf16 %v1335, %v1335
  %v1344 = vpack.c.bf16 %v1336, %v1336
  %v1345 = vpack.c.bf16 %v1337, %v1337
  %v1346 = vpack.c.bf16 %v1338, %v1338
  %v1355 = vunpack.c.l.b16 %v673
  %v1356 = vunpack.c.l.b16 %v674
  %v1357 = vunpack.c.l.b16 %v675
  %v1358 = vunpack.c.l.b16 %v676
  %v1359 = vunpack.c.l.b16 %v677
  %v1360 = vunpack.c.l.b16 %v678
  %v1361 = vunpack.c.l.b16 %v679
  %v1362 = vunpack.c.l.b16 %v680
  %v1363 = vpack.c.b16 %v1356, %v1355
  %v1364 = vpack.c.b16 %v1358, %v1357
  %v1365 = vpack.c.b16 %v1360, %v1359
  %v1366 = vpack.c.b16 %v1362, %v1361
  %v1375 = vunpack.c.l.b16 %v895
  %v1376 = vunpack.c.l.b16 %v896
  %v1377 = vunpack.c.l.b16 %v897
  %v1378 = vunpack.c.l.b16 %v898
  %v1379 = vunpack.c.l.b16 %v899
  %v1380 = vunpack.c.l.b16 %v900
  %v1381 = vunpack.c.l.b16 %v901
  %v1382 = vunpack.c.l.b16 %v902
  %v1383 = vpack.c.b16 %v1376, %v1375
  %v1384 = vpack.c.b16 %v1378, %v1377
  %v1385 = vpack.c.b16 %v1380, %v1379
  %v1386 = vpack.c.b16 %v1382, %v1381
  %1387 = vrot.lane.b32.xlu0 %v1383, 8
  %v1388 = vpop.permute.xlu0 %1387
  %1389 = vrot.lane.b32.xlu0 %v1384, 8
  %v1390 = vpop.permute.xlu0 %1389
  %1391 = vrot.lane.b32.xlu0 %v1385, 8
  %v1392 = vpop.permute.xlu0 %1391
  %1393 = vrot.lane.b32.xlu0 %v1386, 8
  %v1394 = vpop.permute.xlu0 %1393
  %v1403 = vunpack.c.l.b16 %v1117
  %v1404 = vunpack.c.l.b16 %v1118
  %v1405 = vunpack.c.l.b16 %v1119
  %v1406 = vunpack.c.l.b16 %v1120
  %v1407 = vunpack.c.l.b16 %v1121
  %v1408 = vunpack.c.l.b16 %v1122
  %v1409 = vunpack.c.l.b16 %v1123
  %v1410 = vunpack.c.l.b16 %v1124
  %v1411 = vpack.c.b16 %v1404, %v1403
  %v1412 = vpack.c.b16 %v1406, %v1405
  %v1413 = vpack.c.b16 %v1408, %v1407
  %v1414 = vpack.c.b16 %v1410, %v1409
  %1415 = vrot.lane.b32.xlu0 %v1411, 16
  %v1416 = vpop.permute.xlu0 %1415
  %1417 = vrot.lane.b32.xlu0 %v1412, 16
  %v1418 = vpop.permute.xlu0 %1417
  %1419 = vrot.lane.b32.xlu0 %v1413, 16
  %v1420 = vpop.permute.xlu0 %1419
  %1421 = vrot.lane.b32.xlu0 %v1414, 16
  %v1422 = vpop.permute.xlu0 %1421
  %v1431 = vunpack.c.l.b16 %v1339
  %v1432 = vunpack.c.l.b16 %v1340
  %v1433 = vunpack.c.l.b16 %v1341
  %v1434 = vunpack.c.l.b16 %v1342
  %v1435 = vunpack.c.l.b16 %v1343
  %v1436 = vunpack.c.l.b16 %v1344
  %v1437 = vunpack.c.l.b16 %v1345
  %v1438 = vunpack.c.l.b16 %v1346
  %v1439 = vpack.c.b16 %v1432, %v1431
  %v1440 = vpack.c.b16 %v1434, %v1433
  %v1441 = vpack.c.b16 %v1436, %v1435
  %v1442 = vpack.c.b16 %v1438, %v1437
  %1443 = vrot.lane.b32.xlu0 %v1439, 24
  %v1444 = vpop.permute.xlu0 %1443
  %1445 = vrot.lane.b32.xlu0 %v1440, 24
  %v1446 = vpop.permute.xlu0 %1445
  %1447 = vrot.lane.b32.xlu0 %v1441, 24
  %v1448 = vpop.permute.xlu0 %1447
  %1449 = vrot.lane.b32.xlu0 %v1442, 24
  %v1450 = vpop.permute.xlu0 %1449
  %v1453 = vsel %vm461, %v1363, %v1388
  %v1456 = vsel %vm461, %v1364, %v1390
  %v1459 = vsel %vm461, %v1365, %v1392
  %v1462 = vsel %vm461, %v1366, %v1394
  %vm1463 = vcmask 130048
  %v1465 = vsel %vm1463, %v1453, %v1416
  %v1467 = vsel %vm1463, %v1456, %v1418
  %v1469 = vsel %vm1463, %v1459, %v1420
  %v1471 = vsel %vm1463, %v1462, %v1422
  %vm1472 = vcmask 195584
  %v1474 = vsel %vm1472, %v1465, %v1444
  %v1476 = vsel %vm1472, %v1467, %v1446
  %v1478 = vsel %vm1472, %v1469, %v1448
  %v1480 = vsel %vm1472, %v1471, %v1450
  %v1481 = vld [vmem:[#allocation2 + $0x20] sm:$0xf]
  %v1482 = vld [vmem:[#allocation2 + $0x24] sm:$0xf]
  %v1483 = vld [vmem:[#allocation2 + $0x28] sm:$0xf]
  %v1484 = vld [vmem:[#allocation2 + $0x2c] sm:$0xf]
  %v1485 = vld [vmem:[#allocation2 + $0x30] sm:$0xf]
  %v1486 = vld [vmem:[#allocation2 + $0x34] sm:$0xf]
  %v1487 = vld [vmem:[#allocation2 + $0x38] sm:$0xf]
  %v1488 = vld [vmem:[#allocation2 + $0x3c] sm:$0xf]
  %v1489 = vld [vmem:[#allocation3 + $0x20] sm:$0xf]
  %v1490 = vld [vmem:[#allocation3 + $0x24] sm:$0xf]
  %v1491 = vld [vmem:[#allocation3 + $0x28] sm:$0xf]
  %v1492 = vld [vmem:[#allocation3 + $0x2c] sm:$0xf]
  %v1493 = vld [vmem:[#allocation3 + $0x30] sm:$0xf]
  %v1494 = vld [vmem:[#allocation3 + $0x34] sm:$0xf]
  %v1495 = vld [vmem:[#allocation3 + $0x38] sm:$0xf]
  %v1496 = vld [vmem:[#allocation3 + $0x3c] sm:$0xf]
  %v1505 = vunpack.c.l.b16 %v397
  %v1506 = vunpack.c.l.b16 %v398
  %v1507 = vunpack.c.l.b16 %v399
  %v1508 = vunpack.c.l.b16 %v400
  %v1509 = vunpack.c.l.b16 %v401
  %v1510 = vunpack.c.l.b16 %v402
  %v1511 = vunpack.c.l.b16 %v403
  %v1512 = vunpack.c.l.b16 %v404
  %v1513 = vpack.c.b16 %v1506, %v1505
  %v1514 = vpack.c.b16 %v1508, %v1507
  %v1515 = vpack.c.b16 %v1510, %v1509
  %v1516 = vpack.c.b16 %v1512, %v1511
  %v1525 = vunpack.c.l.b16 %v1481
  %v1526 = vunpack.c.l.b16 %v1482
  %v1527 = vunpack.c.l.b16 %v1483
  %v1528 = vunpack.c.l.b16 %v1484
  %v1529 = vunpack.c.l.b16 %v1485
  %v1530 = vunpack.c.l.b16 %v1486
  %v1531 = vunpack.c.l.b16 %v1487
  %v1532 = vunpack.c.l.b16 %v1488
  %v1533 = vpack.c.b16 %v1526, %v1525
  %v1534 = vpack.c.b16 %v1528, %v1527
  %v1535 = vpack.c.b16 %v1530, %v1529
  %v1536 = vpack.c.b16 %v1532, %v1531
  %v1538 = vsel %vm461, %v1513, 0
  %v1541 = vsel %vm461, %v1514, 0
  %v1544 = vsel %vm461, %v1515, 0
  %v1547 = vsel %vm461, %v1516, 0
  %v1550 = vsel %vm461, %v1533, 0
  %v1553 = vsel %vm461, %v1534, 0
  %v1556 = vsel %vm461, %v1535, 0
  %v1559 = vsel %vm461, %v1536, 0
  %1561 = vmatpush.bf16.xpose.msra.mxu0 0
  %1562 = vmatpush.bf16.xpose.msra.mxu0 0
  %1563 = vmatpush.bf16.xpose.msra.mxu0 0
  %1564 = vmatpush.bf16.xpose.msra.mxu0 0
  %1565 = vmatpush.bf16.xpose.msra.mxu0 %v1559
  %1566 = vmatpush.bf16.xpose.msra.mxu0 %v1556
  %1567 = vmatpush.bf16.xpose.msra.mxu0 %v1553
  %1568 = vmatpush.bf16.xpose.msra.mxu0 %v1550
  %1569 = vmatmul.bf16.gmra.mxu0 %v1538
  %v1570 = vpop.f32.mrf.mxu0
  %v1571 = vadd.f32 0.0, %v1570
  %v1572 = vpop.f32.mrf.mxu0
  %v1573 = vadd.f32 0.0, %v1572
  %1574 = vmatmul.bf16.gmra.mxu0 %v1541
  %v1575 = vpop.f32.mrf.mxu0
  %v1576 = vadd.f32 0.0, %v1575
  %v1577 = vpop.f32.mrf.mxu0
  %v1578 = vadd.f32 0.0, %v1577
  %1579 = vmatmul.bf16.gmra.mxu0 %v1544
  %v1580 = vpop.f32.mrf.mxu0
  %v1581 = vadd.f32 0.0, %v1580
  %v1582 = vpop.f32.mrf.mxu0
  %v1583 = vadd.f32 0.0, %v1582
  %1584 = vmatmul.bf16.gmra.mxu0 %v1547
  %v1585 = vpop.f32.mrf.mxu0
  %v1586 = vadd.f32 0.0, %v1585
  %v1587 = vpop.f32.mrf.mxu0
  %v1588 = vadd.f32 0.0, %v1587
  %1589 = vdwg.mxu0
  %v1590 = vsel %vm515, %v1571, -inf
  %1591 = vmax.xlane.f32.xlu0 %v1590
  %v1592 = vpop.xlane.xlu0 %1591
  %v1593 = vsel %vm515, %v1573, -inf
  %1594 = vmax.xlane.f32.xlu0 %v1593
  %v1595 = vpop.xlane.xlu0 %1594
  %v1596 = vsel %vm515, %v1576, -inf
  %1597 = vmax.xlane.f32.xlu0 %v1596
  %v1598 = vpop.xlane.xlu0 %1597
  %v1599 = vsel %vm515, %v1578, -inf
  %1600 = vmax.xlane.f32.xlu0 %v1599
  %v1601 = vpop.xlane.xlu0 %1600
  %v1602 = vsel %vm515, %v1581, -inf
  %1603 = vmax.xlane.f32.xlu0 %v1602
  %v1604 = vpop.xlane.xlu0 %1603
  %v1605 = vsel %vm515, %v1583, -inf
  %1606 = vmax.xlane.f32.xlu0 %v1605
  %v1607 = vpop.xlane.xlu0 %1606
  %v1608 = vsel %vm515, %v1586, -inf
  %1609 = vmax.xlane.f32.xlu0 %v1608
  %v1610 = vpop.xlane.xlu0 %1609
  %v1611 = vsel %vm515, %v1588, -inf
  %1612 = vmax.xlane.f32.xlu0 %v1611
  %v1613 = vpop.xlane.xlu0 %1612
  %v1614 = vsub.f32 %v1571, %v1592
  %v1615 = vsub.f32 %v1573, %v1595
  %v1616 = vsub.f32 %v1576, %v1598
  %v1617 = vsub.f32 %v1578, %v1601
  %v1618 = vsub.f32 %v1581, %v1604
  %v1619 = vsub.f32 %v1583, %v1607
  %v1620 = vsub.f32 %v1586, %v1610
  %v1621 = vsub.f32 %v1588, %v1613
  %v1622 = vmul.f32 %v1614, 1.442695
  %v1623 = vpow.pop %v1622
  %v1624 = vmul.f32 %v1615, 1.442695
  %v1625 = vpow.pop %v1624
  %v1626 = vmul.f32 %v1616, 1.442695
  %v1627 = vpow.pop %v1626
  %v1628 = vmul.f32 %v1617, 1.442695
  %v1629 = vpow.pop %v1628
  %v1630 = vmul.f32 %v1618, 1.442695
  %v1631 = vpow.pop %v1630
  %v1632 = vmul.f32 %v1619, 1.442695
  %v1633 = vpow.pop %v1632
  %v1634 = vmul.f32 %v1620, 1.442695
  %v1635 = vpow.pop %v1634
  %v1636 = vmul.f32 %v1621, 1.442695
  %v1637 = vpow.pop %v1636
  %v1638 = vsel %vm515, %v1623, 0.0
  %1639 = vadd.xlane.f32.xlu0 %v1638
  %v1640 = vpop.xlane.xlu0 %1639
  %v1641 = vsel %vm515, %v1625, 0.0
  %1642 = vadd.xlane.f32.xlu0 %v1641
  %v1643 = vpop.xlane.xlu0 %1642
  %v1644 = vsel %vm515, %v1627, 0.0
  %1645 = vadd.xlane.f32.xlu0 %v1644
  %v1646 = vpop.xlane.xlu0 %1645
  %v1647 = vsel %vm515, %v1629, 0.0
  %1648 = vadd.xlane.f32.xlu0 %v1647
  %v1649 = vpop.xlane.xlu0 %1648
  %v1650 = vsel %vm515, %v1631, 0.0
  %1651 = vadd.xlane.f32.xlu0 %v1650
  %v1652 = vpop.xlane.xlu0 %1651
  %v1653 = vsel %vm515, %v1633, 0.0
  %1654 = vadd.xlane.f32.xlu0 %v1653
  %v1655 = vpop.xlane.xlu0 %1654
  %v1656 = vsel %vm515, %v1635, 0.0
  %1657 = vadd.xlane.f32.xlu0 %v1656
  %v1658 = vpop.xlane.xlu0 %1657
  %v1659 = vsel %vm515, %v1637, 0.0
  %1660 = vadd.xlane.f32.xlu0 %v1659
  %v1661 = vpop.xlane.xlu0 %1660
  %v1662 = vpack.c.bf16 %v1625, %v1623
  %v1663 = vpack.c.bf16 %v1629, %v1627
  %v1664 = vpack.c.bf16 %v1633, %v1631
  %v1665 = vpack.c.bf16 %v1637, %v1635
  %v1674 = vunpack.c.l.b16 %v1489
  %v1675 = vunpack.c.l.b16 %v1490
  %v1676 = vunpack.c.l.b16 %v1491
  %v1677 = vunpack.c.l.b16 %v1492
  %v1678 = vunpack.c.l.b16 %v1493
  %v1679 = vunpack.c.l.b16 %v1494
  %v1680 = vunpack.c.l.b16 %v1495
  %v1681 = vunpack.c.l.b16 %v1496
  %v1682 = vpack.c.b16 %v1675, %v1674
  %v1683 = vpack.c.b16 %v1677, %v1676
  %v1684 = vpack.c.b16 %v1679, %v1678
  %v1685 = vpack.c.b16 %v1681, %v1680
  %v1691 = vsel %vm515, %v1662, 0
  %v1694 = vsel %vm515, %v1663, 0
  %v1697 = vsel %vm515, %v1664, 0
  %v1700 = vsel %vm515, %v1665, 0
  %1702 = vmatpush.bf16.msra.mxu0 0
  %1703 = vmatpush.bf16.msra.mxu0 0
  %1704 = vmatpush.bf16.msra.mxu0 0
  %1705 = vmatpush.bf16.msra.mxu0 0
  %1706 = vmatpush.bf16.msra.mxu0 %v1685
  %1707 = vmatpush.bf16.msra.mxu0 %v1684
  %1708 = vmatpush.bf16.msra.mxu0 %v1683
  %1709 = vmatpush.bf16.msra.mxu0 %v1682
  %1710 = vmatmul.bf16.gmra.mxu0 %v1691
  %v1711 = vpop.f32.mrf.mxu0
  %v1712 = vadd.f32 0.0, %v1711
  %v1713 = vpop.f32.mrf.mxu0
  %v1714 = vadd.f32 0.0, %v1713
  %1715 = vmatmul.bf16.gmra.mxu0 %v1694
  %v1716 = vpop.f32.mrf.mxu0
  %v1717 = vadd.f32 0.0, %v1716
  %v1718 = vpop.f32.mrf.mxu0
  %v1719 = vadd.f32 0.0, %v1718
  %1720 = vmatmul.bf16.gmra.mxu0 %v1697
  %v1721 = vpop.f32.mrf.mxu0
  %v1722 = vadd.f32 0.0, %v1721
  %v1723 = vpop.f32.mrf.mxu0
  %v1724 = vadd.f32 0.0, %v1723
  %1725 = vmatmul.bf16.gmra.mxu0 %v1700
  %v1726 = vpop.f32.mrf.mxu0
  %v1727 = vadd.f32 0.0, %v1726
  %v1728 = vpop.f32.mrf.mxu0
  %v1729 = vadd.f32 0.0, %v1728
  %1730 = vdwg.mxu0
  %v1731 = vrcp.pop %v1640
  %v1732 = vrcp.pop %v1643
  %v1733 = vrcp.pop %v1646
  %v1734 = vrcp.pop %v1649
  %v1735 = vrcp.pop %v1652
  %v1736 = vrcp.pop %v1655
  %v1737 = vrcp.pop %v1658
  %v1738 = vrcp.pop %v1661
  %v1739 = vmul.f32 %v1712, %v1731
  %v1740 = vmul.f32 %v1714, %v1732
  %v1741 = vmul.f32 %v1717, %v1733
  %v1742 = vmul.f32 %v1719, %v1734
  %v1743 = vmul.f32 %v1722, %v1735
  %v1744 = vmul.f32 %v1724, %v1736
  %v1745 = vmul.f32 %v1727, %v1737
  %v1746 = vmul.f32 %v1729, %v1738
  %v1747 = vpack.c.bf16 %v1739, %v1739
  %v1748 = vpack.c.bf16 %v1740, %v1740
  %v1749 = vpack.c.bf16 %v1741, %v1741
  %v1750 = vpack.c.bf16 %v1742, %v1742
  %v1751 = vpack.c.bf16 %v1743, %v1743
  %v1752 = vpack.c.bf16 %v1744, %v1744
  %v1753 = vpack.c.bf16 %v1745, %v1745
  %v1754 = vpack.c.bf16 %v1746, %v1746
  %1755 = vrot.lane.b32.xlu0 %v1513, 120
  %v1756 = vpop.permute.xlu0 %1755
  %1757 = vrot.lane.b32.xlu0 %v1514, 120
  %v1758 = vpop.permute.xlu0 %1757
  %1759 = vrot.lane.b32.xlu0 %v1515, 120
  %v1760 = vpop.permute.xlu0 %1759
  %1761 = vrot.lane.b32.xlu0 %v1516, 120
  %v1762 = vpop.permute.xlu0 %1761
  %1763 = vrot.lane.b32.xlu0 %v1533, 120
  %v1764 = vpop.permute.xlu0 %1763
  %1765 = vrot.lane.b32.xlu0 %v1534, 120
  %v1766 = vpop.permute.xlu0 %1765
  %1767 = vrot.lane.b32.xlu0 %v1535, 120
  %v1768 = vpop.permute.xlu0 %1767
  %1769 = vrot.lane.b32.xlu0 %v1536, 120
  %v1770 = vpop.permute.xlu0 %1769
  %v1772 = vsel %vm461, %v1756, 0
  %v1775 = vsel %vm461, %v1758, 0
  %v1778 = vsel %vm461, %v1760, 0
  %v1781 = vsel %vm461, %v1762, 0
  %v1784 = vsel %vm461, %v1764, 0
  %v1787 = vsel %vm461, %v1766, 0
  %v1790 = vsel %vm461, %v1768, 0
  %v1793 = vsel %vm461, %v1770, 0
  %1795 = vmatpush.bf16.xpose.msra.mxu0 0
  %1796 = vmatpush.bf16.xpose.msra.mxu0 0
  %1797 = vmatpush.bf16.xpose.msra.mxu0 0
  %1798 = vmatpush.bf16.xpose.msra.mxu0 0
  %1799 = vmatpush.bf16.xpose.msra.mxu0 %v1793
  %1800 = vmatpush.bf16.xpose.msra.mxu0 %v1790
  %1801 = vmatpush.bf16.xpose.msra.mxu0 %v1787
  %1802 = vmatpush.bf16.xpose.msra.mxu0 %v1784
  %1803 = vmatmul.bf16.gmra.mxu0 %v1772
  %v1804 = vpop.f32.mrf.mxu0
  %v1805 = vadd.f32 0.0, %v1804
  %v1806 = vpop.f32.mrf.mxu0
  %v1807 = vadd.f32 0.0, %v1806
  %1808 = vmatmul.bf16.gmra.mxu0 %v1775
  %v1809 = vpop.f32.mrf.mxu0
  %v1810 = vadd.f32 0.0, %v1809
  %v1811 = vpop.f32.mrf.mxu0
  %v1812 = vadd.f32 0.0, %v1811
  %1813 = vmatmul.bf16.gmra.mxu0 %v1778
  %v1814 = vpop.f32.mrf.mxu0
  %v1815 = vadd.f32 0.0, %v1814
  %v1816 = vpop.f32.mrf.mxu0
  %v1817 = vadd.f32 0.0, %v1816
  %1818 = vmatmul.bf16.gmra.mxu0 %v1781
  %v1819 = vpop.f32.mrf.mxu0
  %v1820 = vadd.f32 0.0, %v1819
  %v1821 = vpop.f32.mrf.mxu0
  %v1822 = vadd.f32 0.0, %v1821
  %1823 = vdwg.mxu0
  %v1824 = vsel %vm515, %v1805, -inf
  %1825 = vmax.xlane.f32.xlu0 %v1824
  %v1826 = vpop.xlane.xlu0 %1825
  %v1827 = vsel %vm515, %v1807, -inf
  %1828 = vmax.xlane.f32.xlu0 %v1827
  %v1829 = vpop.xlane.xlu0 %1828
  %v1830 = vsel %vm515, %v1810, -inf
  %1831 = vmax.xlane.f32.xlu0 %v1830
  %v1832 = vpop.xlane.xlu0 %1831
  %v1833 = vsel %vm515, %v1812, -inf
  %1834 = vmax.xlane.f32.xlu0 %v1833
  %v1835 = vpop.xlane.xlu0 %1834
  %v1836 = vsel %vm515, %v1815, -inf
  %1837 = vmax.xlane.f32.xlu0 %v1836
  %v1838 = vpop.xlane.xlu0 %1837
  %v1839 = vsel %vm515, %v1817, -inf
  %1840 = vmax.xlane.f32.xlu0 %v1839
  %v1841 = vpop.xlane.xlu0 %1840
  %v1842 = vsel %vm515, %v1820, -inf
  %1843 = vmax.xlane.f32.xlu0 %v1842
  %v1844 = vpop.xlane.xlu0 %1843
  %v1845 = vsel %vm515, %v1822, -inf
  %1846 = vmax.xlane.f32.xlu0 %v1845
  %v1847 = vpop.xlane.xlu0 %1846
  %v1848 = vsub.f32 %v1805, %v1826
  %v1849 = vsub.f32 %v1807, %v1829
  %v1850 = vsub.f32 %v1810, %v1832
  %v1851 = vsub.f32 %v1812, %v1835
  %v1852 = vsub.f32 %v1815, %v1838
  %v1853 = vsub.f32 %v1817, %v1841
  %v1854 = vsub.f32 %v1820, %v1844
  %v1855 = vsub.f32 %v1822, %v1847
  %v1856 = vmul.f32 %v1848, 1.442695
  %v1857 = vpow.pop %v1856
  %v1858 = vmul.f32 %v1849, 1.442695
  %v1859 = vpow.pop %v1858
  %v1860 = vmul.f32 %v1850, 1.442695
  %v1861 = vpow.pop %v1860
  %v1862 = vmul.f32 %v1851, 1.442695
  %v1863 = vpow.pop %v1862
  %v1864 = vmul.f32 %v1852, 1.442695
  %v1865 = vpow.pop %v1864
  %v1866 = vmul.f32 %v1853, 1.442695
  %v1867 = vpow.pop %v1866
  %v1868 = vmul.f32 %v1854, 1.442695
  %v1869 = vpow.pop %v1868
  %v1870 = vmul.f32 %v1855, 1.442695
  %v1871 = vpow.pop %v1870
  %v1872 = vsel %vm515, %v1857, 0.0
  %1873 = vadd.xlane.f32.xlu0 %v1872
  %v1874 = vpop.xlane.xlu0 %1873
  %v1875 = vsel %vm515, %v1859, 0.0
  %1876 = vadd.xlane.f32.xlu0 %v1875
  %v1877 = vpop.xlane.xlu0 %1876
  %v1878 = vsel %vm515, %v1861, 0.0
  %1879 = vadd.xlane.f32.xlu0 %v1878
  %v1880 = vpop.xlane.xlu0 %1879
  %v1881 = vsel %vm515, %v1863, 0.0
  %1882 = vadd.xlane.f32.xlu0 %v1881
  %v1883 = vpop.xlane.xlu0 %1882
  %v1884 = vsel %vm515, %v1865, 0.0
  %1885 = vadd.xlane.f32.xlu0 %v1884
  %v1886 = vpop.xlane.xlu0 %1885
  %v1887 = vsel %vm515, %v1867, 0.0
  %1888 = vadd.xlane.f32.xlu0 %v1887
  %v1889 = vpop.xlane.xlu0 %1888
  %v1890 = vsel %vm515, %v1869, 0.0
  %1891 = vadd.xlane.f32.xlu0 %v1890
  %v1892 = vpop.xlane.xlu0 %1891
  %v1893 = vsel %vm515, %v1871, 0.0
  %1894 = vadd.xlane.f32.xlu0 %v1893
  %v1895 = vpop.xlane.xlu0 %1894
  %v1896 = vpack.c.bf16 %v1859, %v1857
  %v1897 = vpack.c.bf16 %v1863, %v1861
  %v1898 = vpack.c.bf16 %v1867, %v1865
  %v1899 = vpack.c.bf16 %v1871, %v1869
  %1900 = vrot.lane.b32.xlu0 %v1682, 120
  %v1901 = vpop.permute.xlu0 %1900
  %1902 = vrot.lane.b32.xlu0 %v1683, 120
  %v1903 = vpop.permute.xlu0 %1902
  %1904 = vrot.lane.b32.xlu0 %v1684, 120
  %v1905 = vpop.permute.xlu0 %1904
  %1906 = vrot.lane.b32.xlu0 %v1685, 120
  %v1907 = vpop.permute.xlu0 %1906
  %v1913 = vsel %vm515, %v1896, 0
  %v1916 = vsel %vm515, %v1897, 0
  %v1919 = vsel %vm515, %v1898, 0
  %v1922 = vsel %vm515, %v1899, 0
  %1924 = vmatpush.bf16.msra.mxu0 0
  %1925 = vmatpush.bf16.msra.mxu0 0
  %1926 = vmatpush.bf16.msra.mxu0 0
  %1927 = vmatpush.bf16.msra.mxu0 0
  %1928 = vmatpush.bf16.msra.mxu0 %v1907
  %1929 = vmatpush.bf16.msra.mxu0 %v1905
  %1930 = vmatpush.bf16.msra.mxu0 %v1903
  %1931 = vmatpush.bf16.msra.mxu0 %v1901
  %1932 = vmatmul.bf16.gmra.mxu0 %v1913
  %v1933 = vpop.f32.mrf.mxu0
  %v1934 = vadd.f32 0.0, %v1933
  %v1935 = vpop.f32.mrf.mxu0
  %v1936 = vadd.f32 0.0, %v1935
  %1937 = vmatmul.bf16.gmra.mxu0 %v1916
  %v1938 = vpop.f32.mrf.mxu0
  %v1939 = vadd.f32 0.0, %v1938
  %v1940 = vpop.f32.mrf.mxu0
  %v1941 = vadd.f32 0.0, %v1940
  %1942 = vmatmul.bf16.gmra.mxu0 %v1919
  %v1943 = vpop.f32.mrf.mxu0
  %v1944 = vadd.f32 0.0, %v1943
  %v1945 = vpop.f32.mrf.mxu0
  %v1946 = vadd.f32 0.0, %v1945
  %1947 = vmatmul.bf16.gmra.mxu0 %v1922
  %v1948 = vpop.f32.mrf.mxu0
  %v1949 = vadd.f32 0.0, %v1948
  %v1950 = vpop.f32.mrf.mxu0
  %v1951 = vadd.f32 0.0, %v1950
  %1952 = vdwg.mxu0
  %v1953 = vrcp.pop %v1874
  %v1954 = vrcp.pop %v1877
  %v1955 = vrcp.pop %v1880
  %v1956 = vrcp.pop %v1883
  %v1957 = vrcp.pop %v1886
  %v1958 = vrcp.pop %v1889
  %v1959 = vrcp.pop %v1892
  %v1960 = vrcp.pop %v1895
  %v1961 = vmul.f32 %v1934, %v1953
  %v1962 = vmul.f32 %v1936, %v1954
  %v1963 = vmul.f32 %v1939, %v1955
  %v1964 = vmul.f32 %v1941, %v1956
  %v1965 = vmul.f32 %v1944, %v1957
  %v1966 = vmul.f32 %v1946, %v1958
  %v1967 = vmul.f32 %v1949, %v1959
  %v1968 = vmul.f32 %v1951, %v1960
  %v1969 = vpack.c.bf16 %v1961, %v1961
  %v1970 = vpack.c.bf16 %v1962, %v1962
  %v1971 = vpack.c.bf16 %v1963, %v1963
  %v1972 = vpack.c.bf16 %v1964, %v1964
  %v1973 = vpack.c.bf16 %v1965, %v1965
  %v1974 = vpack.c.bf16 %v1966, %v1966
  %v1975 = vpack.c.bf16 %v1967, %v1967
  %v1976 = vpack.c.bf16 %v1968, %v1968
  %1977 = vrot.lane.b32.xlu0 %v1513, 112
  %v1978 = vpop.permute.xlu0 %1977
  %1979 = vrot.lane.b32.xlu0 %v1514, 112
  %v1980 = vpop.permute.xlu0 %1979
  %1981 = vrot.lane.b32.xlu0 %v1515, 112
  %v1982 = vpop.permute.xlu0 %1981
  %1983 = vrot.lane.b32.xlu0 %v1516, 112
  %v1984 = vpop.permute.xlu0 %1983
  %1985 = vrot.lane.b32.xlu0 %v1533, 112
  %v1986 = vpop.permute.xlu0 %1985
  %1987 = vrot.lane.b32.xlu0 %v1534, 112
  %v1988 = vpop.permute.xlu0 %1987
  %1989 = vrot.lane.b32.xlu0 %v1535, 112
  %v1990 = vpop.permute.xlu0 %1989
  %1991 = vrot.lane.b32.xlu0 %v1536, 112
  %v1992 = vpop.permute.xlu0 %1991
  %v1994 = vsel %vm461, %v1978, 0
  %v1997 = vsel %vm461, %v1980, 0
  %v2000 = vsel %vm461, %v1982, 0
  %v2003 = vsel %vm461, %v1984, 0
  %v2006 = vsel %vm461, %v1986, 0
  %v2009 = vsel %vm461, %v1988, 0
  %v2012 = vsel %vm461, %v1990, 0
  %v2015 = vsel %vm461, %v1992, 0
  %2017 = vmatpush.bf16.xpose.msra.mxu0 0
  %2018 = vmatpush.bf16.xpose.msra.mxu0 0
  %2019 = vmatpush.bf16.xpose.msra.mxu0 0
  %2020 = vmatpush.bf16.xpose.msra.mxu0 0
  %2021 = vmatpush.bf16.xpose.msra.mxu0 %v2015
  %2022 = vmatpush.bf16.xpose.msra.mxu0 %v2012
  %2023 = vmatpush.bf16.xpose.msra.mxu0 %v2009
  %2024 = vmatpush.bf16.xpose.msra.mxu0 %v2006
  %2025 = vmatmul.bf16.gmra.mxu0 %v1994
  %v2026 = vpop.f32.mrf.mxu0
  %v2027 = vadd.f32 0.0, %v2026
  %v2028 = vpop.f32.mrf.mxu0
  %v2029 = vadd.f32 0.0, %v2028
  %2030 = vmatmul.bf16.gmra.mxu0 %v1997
  %v2031 = vpop.f32.mrf.mxu0
  %v2032 = vadd.f32 0.0, %v2031
  %v2033 = vpop.f32.mrf.mxu0
  %v2034 = vadd.f32 0.0, %v2033
  %2035 = vmatmul.bf16.gmra.mxu0 %v2000
  %v2036 = vpop.f32.mrf.mxu0
  %v2037 = vadd.f32 0.0, %v2036
  %v2038 = vpop.f32.mrf.mxu0
  %v2039 = vadd.f32 0.0, %v2038
  %2040 = vmatmul.bf16.gmra.mxu0 %v2003
  %v2041 = vpop.f32.mrf.mxu0
  %v2042 = vadd.f32 0.0, %v2041
  %v2043 = vpop.f32.mrf.mxu0
  %v2044 = vadd.f32 0.0, %v2043
  %2045 = vdwg.mxu0
  %v2046 = vsel %vm515, %v2027, -inf
  %2047 = vmax.xlane.f32.xlu0 %v2046
  %v2048 = vpop.xlane.xlu0 %2047
  %v2049 = vsel %vm515, %v2029, -inf
  %2050 = vmax.xlane.f32.xlu0 %v2049
  %v2051 = vpop.xlane.xlu0 %2050
  %v2052 = vsel %vm515, %v2032, -inf
  %2053 = vmax.xlane.f32.xlu0 %v2052
  %v2054 = vpop.xlane.xlu0 %2053
  %v2055 = vsel %vm515, %v2034, -inf
  %2056 = vmax.xlane.f32.xlu0 %v2055
  %v2057 = vpop.xlane.xlu0 %2056
  %v2058 = vsel %vm515, %v2037, -inf
  %2059 = vmax.xlane.f32.xlu0 %v2058
  %v2060 = vpop.xlane.xlu0 %2059
  %v2061 = vsel %vm515, %v2039, -inf
  %2062 = vmax.xlane.f32.xlu0 %v2061
  %v2063 = vpop.xlane.xlu0 %2062
  %v2064 = vsel %vm515, %v2042, -inf
  %2065 = vmax.xlane.f32.xlu0 %v2064
  %v2066 = vpop.xlane.xlu0 %2065
  %v2067 = vsel %vm515, %v2044, -inf
  %2068 = vmax.xlane.f32.xlu0 %v2067
  %v2069 = vpop.xlane.xlu0 %2068
  %v2070 = vsub.f32 %v2027, %v2048
  %v2071 = vsub.f32 %v2029, %v2051
  %v2072 = vsub.f32 %v2032, %v2054
  %v2073 = vsub.f32 %v2034, %v2057
  %v2074 = vsub.f32 %v2037, %v2060
  %v2075 = vsub.f32 %v2039, %v2063
  %v2076 = vsub.f32 %v2042, %v2066
  %v2077 = vsub.f32 %v2044, %v2069
  %v2078 = vmul.f32 %v2070, 1.442695
  %v2079 = vpow.pop %v2078
  %v2080 = vmul.f32 %v2071, 1.442695
  %v2081 = vpow.pop %v2080
  %v2082 = vmul.f32 %v2072, 1.442695
  %v2083 = vpow.pop %v2082
  %v2084 = vmul.f32 %v2073, 1.442695
  %v2085 = vpow.pop %v2084
  %v2086 = vmul.f32 %v2074, 1.442695
  %v2087 = vpow.pop %v2086
  %v2088 = vmul.f32 %v2075, 1.442695
  %v2089 = vpow.pop %v2088
  %v2090 = vmul.f32 %v2076, 1.442695
  %v2091 = vpow.pop %v2090
  %v2092 = vmul.f32 %v2077, 1.442695
  %v2093 = vpow.pop %v2092
  %v2094 = vsel %vm515, %v2079, 0.0
  %2095 = vadd.xlane.f32.xlu0 %v2094
  %v2096 = vpop.xlane.xlu0 %2095
  %v2097 = vsel %vm515, %v2081, 0.0
  %2098 = vadd.xlane.f32.xlu0 %v2097
  %v2099 = vpop.xlane.xlu0 %2098
  %v2100 = vsel %vm515, %v2083, 0.0
  %2101 = vadd.xlane.f32.xlu0 %v2100
  %v2102 = vpop.xlane.xlu0 %2101
  %v2103 = vsel %vm515, %v2085, 0.0
  %2104 = vadd.xlane.f32.xlu0 %v2103
  %v2105 = vpop.xlane.xlu0 %2104
  %v2106 = vsel %vm515, %v2087, 0.0
  %2107 = vadd.xlane.f32.xlu0 %v2106
  %v2108 = vpop.xlane.xlu0 %2107
  %v2109 = vsel %vm515, %v2089, 0.0
  %2110 = vadd.xlane.f32.xlu0 %v2109
  %v2111 = vpop.xlane.xlu0 %2110
  %v2112 = vsel %vm515, %v2091, 0.0
  %2113 = vadd.xlane.f32.xlu0 %v2112
  %v2114 = vpop.xlane.xlu0 %2113
  %v2115 = vsel %vm515, %v2093, 0.0
  %2116 = vadd.xlane.f32.xlu0 %v2115
  %v2117 = vpop.xlane.xlu0 %2116
  %v2118 = vpack.c.bf16 %v2081, %v2079
  %v2119 = vpack.c.bf16 %v2085, %v2083
  %v2120 = vpack.c.bf16 %v2089, %v2087
  %v2121 = vpack.c.bf16 %v2093, %v2091
  %2122 = vrot.lane.b32.xlu0 %v1682, 112
  %v2123 = vpop.permute.xlu0 %2122
  %2124 = vrot.lane.b32.xlu0 %v1683, 112
  %v2125 = vpop.permute.xlu0 %2124
  %2126 = vrot.lane.b32.xlu0 %v1684, 112
  %v2127 = vpop.permute.xlu0 %2126
  %2128 = vrot.lane.b32.xlu0 %v1685, 112
  %v2129 = vpop.permute.xlu0 %2128
  %v2135 = vsel %vm515, %v2118, 0
  %v2138 = vsel %vm515, %v2119, 0
  %v2141 = vsel %vm515, %v2120, 0
  %v2144 = vsel %vm515, %v2121, 0
  %2146 = vmatpush.bf16.msra.mxu0 0
  %2147 = vmatpush.bf16.msra.mxu0 0
  %2148 = vmatpush.bf16.msra.mxu0 0
  %2149 = vmatpush.bf16.msra.mxu0 0
  %2150 = vmatpush.bf16.msra.mxu0 %v2129
  %2151 = vmatpush.bf16.msra.mxu0 %v2127
  %2152 = vmatpush.bf16.msra.mxu0 %v2125
  %2153 = vmatpush.bf16.msra.mxu0 %v2123
  %2154 = vmatmul.bf16.gmra.mxu0 %v2135
  %v2155 = vpop.f32.mrf.mxu0
  %v2156 = vadd.f32 0.0, %v2155
  %v2157 = vpop.f32.mrf.mxu0
  %v2158 = vadd.f32 0.0, %v2157
  %2159 = vmatmul.bf16.gmra.mxu0 %v2138
  %v2160 = vpop.f32.mrf.mxu0
  %v2161 = vadd.f32 0.0, %v2160
  %v2162 = vpop.f32.mrf.mxu0
  %v2163 = vadd.f32 0.0, %v2162
  %2164 = vmatmul.bf16.gmra.mxu0 %v2141
  %v2165 = vpop.f32.mrf.mxu0
  %v2166 = vadd.f32 0.0, %v2165
  %v2167 = vpop.f32.mrf.mxu0
  %v2168 = vadd.f32 0.0, %v2167
  %2169 = vmatmul.bf16.gmra.mxu0 %v2144
  %v2170 = vpop.f32.mrf.mxu0
  %v2171 = vadd.f32 0.0, %v2170
  %v2172 = vpop.f32.mrf.mxu0
  %v2173 = vadd.f32 0.0, %v2172
  %2174 = vdwg.mxu0
  %v2175 = vrcp.pop %v2096
  %v2176 = vrcp.pop %v2099
  %v2177 = vrcp.pop %v2102
  %v2178 = vrcp.pop %v2105
  %v2179 = vrcp.pop %v2108
  %v2180 = vrcp.pop %v2111
  %v2181 = vrcp.pop %v2114
  %v2182 = vrcp.pop %v2117
  %v2183 = vmul.f32 %v2156, %v2175
  %v2184 = vmul.f32 %v2158, %v2176
  %v2185 = vmul.f32 %v2161, %v2177
  %v2186 = vmul.f32 %v2163, %v2178
  %v2187 = vmul.f32 %v2166, %v2179
  %v2188 = vmul.f32 %v2168, %v2180
  %v2189 = vmul.f32 %v2171, %v2181
  %v2190 = vmul.f32 %v2173, %v2182
  %v2191 = vpack.c.bf16 %v2183, %v2183
  %v2192 = vpack.c.bf16 %v2184, %v2184
  %v2193 = vpack.c.bf16 %v2185, %v2185
  %v2194 = vpack.c.bf16 %v2186, %v2186
  %v2195 = vpack.c.bf16 %v2187, %v2187
  %v2196 = vpack.c.bf16 %v2188, %v2188
  %v2197 = vpack.c.bf16 %v2189, %v2189
  %v2198 = vpack.c.bf16 %v2190, %v2190
  %2199 = vrot.lane.b32.xlu0 %v1513, 104
  %v2200 = vpop.permute.xlu0 %2199
  %2201 = vrot.lane.b32.xlu0 %v1514, 104
  %v2202 = vpop.permute.xlu0 %2201
  %2203 = vrot.lane.b32.xlu0 %v1515, 104
  %v2204 = vpop.permute.xlu0 %2203
  %2205 = vrot.lane.b32.xlu0 %v1516, 104
  %v2206 = vpop.permute.xlu0 %2205
  %2207 = vrot.lane.b32.xlu0 %v1533, 104
  %v2208 = vpop.permute.xlu0 %2207
  %2209 = vrot.lane.b32.xlu0 %v1534, 104
  %v2210 = vpop.permute.xlu0 %2209
  %2211 = vrot.lane.b32.xlu0 %v1535, 104
  %v2212 = vpop.permute.xlu0 %2211
  %2213 = vrot.lane.b32.xlu0 %v1536, 104
  %v2214 = vpop.permute.xlu0 %2213
  %v2216 = vsel %vm461, %v2200, 0
  %v2219 = vsel %vm461, %v2202, 0
  %v2222 = vsel %vm461, %v2204, 0
  %v2225 = vsel %vm461, %v2206, 0
  %v2228 = vsel %vm461, %v2208, 0
  %v2231 = vsel %vm461, %v2210, 0
  %v2234 = vsel %vm461, %v2212, 0
  %v2237 = vsel %vm461, %v2214, 0
  %2239 = vmatpush.bf16.xpose.msra.mxu0 0
  %2240 = vmatpush.bf16.xpose.msra.mxu0 0
  %2241 = vmatpush.bf16.xpose.msra.mxu0 0
  %2242 = vmatpush.bf16.xpose.msra.mxu0 0
  %2243 = vmatpush.bf16.xpose.msra.mxu0 %v2237
  %2244 = vmatpush.bf16.xpose.msra.mxu0 %v2234
  %2245 = vmatpush.bf16.xpose.msra.mxu0 %v2231
  %2246 = vmatpush.bf16.xpose.msra.mxu0 %v2228
  %2247 = vmatmul.bf16.gmra.mxu0 %v2216
  %v2248 = vpop.f32.mrf.mxu0
  %v2249 = vadd.f32 0.0, %v2248
  %v2250 = vpop.f32.mrf.mxu0
  %v2251 = vadd.f32 0.0, %v2250
  %2252 = vmatmul.bf16.gmra.mxu0 %v2219
  %v2253 = vpop.f32.mrf.mxu0
  %v2254 = vadd.f32 0.0, %v2253
  %v2255 = vpop.f32.mrf.mxu0
  %v2256 = vadd.f32 0.0, %v2255
  %2257 = vmatmul.bf16.gmra.mxu0 %v2222
  %v2258 = vpop.f32.mrf.mxu0
  %v2259 = vadd.f32 0.0, %v2258
  %v2260 = vpop.f32.mrf.mxu0
  %v2261 = vadd.f32 0.0, %v2260
  %2262 = vmatmul.bf16.gmra.mxu0 %v2225
  %v2263 = vpop.f32.mrf.mxu0
  %v2264 = vadd.f32 0.0, %v2263
  %v2265 = vpop.f32.mrf.mxu0
  %v2266 = vadd.f32 0.0, %v2265
  %2267 = vdwg.mxu0
  %v2268 = vsel %vm515, %v2249, -inf
  %2269 = vmax.xlane.f32.xlu0 %v2268
  %v2270 = vpop.xlane.xlu0 %2269
  %v2271 = vsel %vm515, %v2251, -inf
  %2272 = vmax.xlane.f32.xlu0 %v2271
  %v2273 = vpop.xlane.xlu0 %2272
  %v2274 = vsel %vm515, %v2254, -inf
  %2275 = vmax.xlane.f32.xlu0 %v2274
  %v2276 = vpop.xlane.xlu0 %2275
  %v2277 = vsel %vm515, %v2256, -inf
  %2278 = vmax.xlane.f32.xlu0 %v2277
  %v2279 = vpop.xlane.xlu0 %2278
  %v2280 = vsel %vm515, %v2259, -inf
  %2281 = vmax.xlane.f32.xlu0 %v2280
  %v2282 = vpop.xlane.xlu0 %2281
  %v2283 = vsel %vm515, %v2261, -inf
  %2284 = vmax.xlane.f32.xlu0 %v2283
  %v2285 = vpop.xlane.xlu0 %2284
  %v2286 = vsel %vm515, %v2264, -inf
  %2287 = vmax.xlane.f32.xlu0 %v2286
  %v2288 = vpop.xlane.xlu0 %2287
  %v2289 = vsel %vm515, %v2266, -inf
  %2290 = vmax.xlane.f32.xlu0 %v2289
  %v2291 = vpop.xlane.xlu0 %2290
  %v2292 = vsub.f32 %v2249, %v2270
  %v2293 = vsub.f32 %v2251, %v2273
  %v2294 = vsub.f32 %v2254, %v2276
  %v2295 = vsub.f32 %v2256, %v2279
  %v2296 = vsub.f32 %v2259, %v2282
  %v2297 = vsub.f32 %v2261, %v2285
  %v2298 = vsub.f32 %v2264, %v2288
  %v2299 = vsub.f32 %v2266, %v2291
  %v2300 = vmul.f32 %v2292, 1.442695
  %v2301 = vpow.pop %v2300
  %v2302 = vmul.f32 %v2293, 1.442695
  %v2303 = vpow.pop %v2302
  %v2304 = vmul.f32 %v2294, 1.442695
  %v2305 = vpow.pop %v2304
  %v2306 = vmul.f32 %v2295, 1.442695
  %v2307 = vpow.pop %v2306
  %v2308 = vmul.f32 %v2296, 1.442695
  %v2309 = vpow.pop %v2308
  %v2310 = vmul.f32 %v2297, 1.442695
  %v2311 = vpow.pop %v2310
  %v2312 = vmul.f32 %v2298, 1.442695
  %v2313 = vpow.pop %v2312
  %v2314 = vmul.f32 %v2299, 1.442695
  %v2315 = vpow.pop %v2314
  %v2316 = vsel %vm515, %v2301, 0.0
  %2317 = vadd.xlane.f32.xlu0 %v2316
  %v2318 = vpop.xlane.xlu0 %2317
  %v2319 = vsel %vm515, %v2303, 0.0
  %2320 = vadd.xlane.f32.xlu0 %v2319
  %v2321 = vpop.xlane.xlu0 %2320
  %v2322 = vsel %vm515, %v2305, 0.0
  %2323 = vadd.xlane.f32.xlu0 %v2322
  %v2324 = vpop.xlane.xlu0 %2323
  %v2325 = vsel %vm515, %v2307, 0.0
  %2326 = vadd.xlane.f32.xlu0 %v2325
  %v2327 = vpop.xlane.xlu0 %2326
  %v2328 = vsel %vm515, %v2309, 0.0
  %2329 = vadd.xlane.f32.xlu0 %v2328
  %v2330 = vpop.xlane.xlu0 %2329
  %v2331 = vsel %vm515, %v2311, 0.0
  %2332 = vadd.xlane.f32.xlu0 %v2331
  %v2333 = vpop.xlane.xlu0 %2332
  %v2334 = vsel %vm515, %v2313, 0.0
  %2335 = vadd.xlane.f32.xlu0 %v2334
  %v2336 = vpop.xlane.xlu0 %2335
  %v2337 = vsel %vm515, %v2315, 0.0
  %2338 = vadd.xlane.f32.xlu0 %v2337
  %v2339 = vpop.xlane.xlu0 %2338
  %v2340 = vpack.c.bf16 %v2303, %v2301
  %v2341 = vpack.c.bf16 %v2307, %v2305
  %v2342 = vpack.c.bf16 %v2311, %v2309
  %v2343 = vpack.c.bf16 %v2315, %v2313
  %2344 = vrot.lane.b32.xlu0 %v1682, 104
  %v2345 = vpop.permute.xlu0 %2344
  %2346 = vrot.lane.b32.xlu0 %v1683, 104
  %v2347 = vpop.permute.xlu0 %2346
  %2348 = vrot.lane.b32.xlu0 %v1684, 104
  %v2349 = vpop.permute.xlu0 %2348
  %2350 = vrot.lane.b32.xlu0 %v1685, 104
  %v2351 = vpop.permute.xlu0 %2350
  %v2357 = vsel %vm515, %v2340, 0
  %v2360 = vsel %vm515, %v2341, 0
  %v2363 = vsel %vm515, %v2342, 0
  %v2366 = vsel %vm515, %v2343, 0
  %2368 = vmatpush.bf16.msra.mxu0 0
  %2369 = vmatpush.bf16.msra.mxu0 0
  %2370 = vmatpush.bf16.msra.mxu0 0
  %2371 = vmatpush.bf16.msra.mxu0 0
  %2372 = vmatpush.bf16.msra.mxu0 %v2351
  %2373 = vmatpush.bf16.msra.mxu0 %v2349
  %2374 = vmatpush.bf16.msra.mxu0 %v2347
  %2375 = vmatpush.bf16.msra.mxu0 %v2345
  %2376 = vmatmul.bf16.gmra.mxu0 %v2357
  %v2377 = vpop.f32.mrf.mxu0
  %v2378 = vadd.f32 0.0, %v2377
  %v2379 = vpop.f32.mrf.mxu0
  %v2380 = vadd.f32 0.0, %v2379
  %2381 = vmatmul.bf16.gmra.mxu0 %v2360
  %v2382 = vpop.f32.mrf.mxu0
  %v2383 = vadd.f32 0.0, %v2382
  %v2384 = vpop.f32.mrf.mxu0
  %v2385 = vadd.f32 0.0, %v2384
  %2386 = vmatmul.bf16.gmra.mxu0 %v2363
  %v2387 = vpop.f32.mrf.mxu0
  %v2388 = vadd.f32 0.0, %v2387
  %v2389 = vpop.f32.mrf.mxu0
  %v2390 = vadd.f32 0.0, %v2389
  %2391 = vmatmul.bf16.gmra.mxu0 %v2366
  %v2392 = vpop.f32.mrf.mxu0
  %v2393 = vadd.f32 0.0, %v2392
  %v2394 = vpop.f32.mrf.mxu0
  %v2395 = vadd.f32 0.0, %v2394
  %2396 = vdwg.mxu0
  %v2397 = vrcp.pop %v2318
  %v2398 = vrcp.pop %v2321
  %v2399 = vrcp.pop %v2324
  %v2400 = vrcp.pop %v2327
  %v2401 = vrcp.pop %v2330
  %v2402 = vrcp.pop %v2333
  %v2403 = vrcp.pop %v2336
  %v2404 = vrcp.pop %v2339
  %v2405 = vmul.f32 %v2378, %v2397
  %v2406 = vmul.f32 %v2380, %v2398
  %v2407 = vmul.f32 %v2383, %v2399
  %v2408 = vmul.f32 %v2385, %v2400
  %v2409 = vmul.f32 %v2388, %v2401
  %v2410 = vmul.f32 %v2390, %v2402
  %v2411 = vmul.f32 %v2393, %v2403
  %v2412 = vmul.f32 %v2395, %v2404
  %v2413 = vpack.c.bf16 %v2405, %v2405
  %v2414 = vpack.c.bf16 %v2406, %v2406
  %v2415 = vpack.c.bf16 %v2407, %v2407
  %v2416 = vpack.c.bf16 %v2408, %v2408
  %v2417 = vpack.c.bf16 %v2409, %v2409
  %v2418 = vpack.c.bf16 %v2410, %v2410
  %v2419 = vpack.c.bf16 %v2411, %v2411
  %v2420 = vpack.c.bf16 %v2412, %v2412
  %v2429 = vunpack.c.l.b16 %v1747
  %v2430 = vunpack.c.l.b16 %v1748
  %v2431 = vunpack.c.l.b16 %v1749
  %v2432 = vunpack.c.l.b16 %v1750
  %v2433 = vunpack.c.l.b16 %v1751
  %v2434 = vunpack.c.l.b16 %v1752
  %v2435 = vunpack.c.l.b16 %v1753
  %v2436 = vunpack.c.l.b16 %v1754
  %v2437 = vpack.c.b16 %v2430, %v2429
  %v2438 = vpack.c.b16 %v2432, %v2431
  %v2439 = vpack.c.b16 %v2434, %v2433
  %v2440 = vpack.c.b16 %v2436, %v2435
  %v2449 = vunpack.c.l.b16 %v1969
  %v2450 = vunpack.c.l.b16 %v1970
  %v2451 = vunpack.c.l.b16 %v1971
  %v2452 = vunpack.c.l.b16 %v1972
  %v2453 = vunpack.c.l.b16 %v1973
  %v2454 = vunpack.c.l.b16 %v1974
  %v2455 = vunpack.c.l.b16 %v1975
  %v2456 = vunpack.c.l.b16 %v1976
  %v2457 = vpack.c.b16 %v2450, %v2449
  %v2458 = vpack.c.b16 %v2452, %v2451
  %v2459 = vpack.c.b16 %v2454, %v2453
  %v2460 = vpack.c.b16 %v2456, %v2455
  %2461 = vrot.lane.b32.xlu0 %v2457, 8
  %v2462 = vpop.permute.xlu0 %2461
  %2463 = vrot.lane.b32.xlu0 %v2458, 8
  %v2464 = vpop.permute.xlu0 %2463
  %2465 = vrot.lane.b32.xlu0 %v2459, 8
  %v2466 = vpop.permute.xlu0 %2465
  %2467 = vrot.lane.b32.xlu0 %v2460, 8
  %v2468 = vpop.permute.xlu0 %2467
  %v2477 = vunpack.c.l.b16 %v2191
  %v2478 = vunpack.c.l.b16 %v2192
  %v2479 = vunpack.c.l.b16 %v2193
  %v2480 = vunpack.c.l.b16 %v2194
  %v2481 = vunpack.c.l.b16 %v2195
  %v2482 = vunpack.c.l.b16 %v2196
  %v2483 = vunpack.c.l.b16 %v2197
  %v2484 = vunpack.c.l.b16 %v2198
  %v2485 = vpack.c.b16 %v2478, %v2477
  %v2486 = vpack.c.b16 %v2480, %v2479
  %v2487 = vpack.c.b16 %v2482, %v2481
  %v2488 = vpack.c.b16 %v2484, %v2483
  %2489 = vrot.lane.b32.xlu0 %v2485, 16
  %v2490 = vpop.permute.xlu0 %2489
  %2491 = vrot.lane.b32.xlu0 %v2486, 16
  %v2492 = vpop.permute.xlu0 %2491
  %2493 = vrot.lane.b32.xlu0 %v2487, 16
  %v2494 = vpop.permute.xlu0 %2493
  %2495 = vrot.lane.b32.xlu0 %v2488, 16
  %v2496 = vpop.permute.xlu0 %2495
  %v2505 = vunpack.c.l.b16 %v2413
  %v2506 = vunpack.c.l.b16 %v2414
  %v2507 = vunpack.c.l.b16 %v2415
  %v2508 = vunpack.c.l.b16 %v2416
  %v2509 = vunpack.c.l.b16 %v2417
  %v2510 = vunpack.c.l.b16 %v2418
  %v2511 = vunpack.c.l.b16 %v2419
  %v2512 = vunpack.c.l.b16 %v2420
  %v2513 = vpack.c.b16 %v2506, %v2505
  %v2514 = vpack.c.b16 %v2508, %v2507
  %v2515 = vpack.c.b16 %v2510, %v2509
  %v2516 = vpack.c.b16 %v2512, %v2511
  %2517 = vrot.lane.b32.xlu0 %v2513, 24
  %v2518 = vpop.permute.xlu0 %2517
  %2519 = vrot.lane.b32.xlu0 %v2514, 24
  %v2520 = vpop.permute.xlu0 %2519
  %2521 = vrot.lane.b32.xlu0 %v2515, 24
  %v2522 = vpop.permute.xlu0 %2521
  %2523 = vrot.lane.b32.xlu0 %v2516, 24
  %v2524 = vpop.permute.xlu0 %2523
  %v2527 = vsel %vm461, %v2437, %v2462
  %v2530 = vsel %vm461, %v2438, %v2464
  %v2533 = vsel %vm461, %v2439, %v2466
  %v2536 = vsel %vm461, %v2440, %v2468
  %v2538 = vsel %vm1463, %v2527, %v2490
  %v2540 = vsel %vm1463, %v2530, %v2492
  %v2542 = vsel %vm1463, %v2533, %v2494
  %v2544 = vsel %vm1463, %v2536, %v2496
  %v2546 = vsel %vm1472, %v2538, %v2518
  %v2548 = vsel %vm1472, %v2540, %v2520
  %v2550 = vsel %vm1472, %v2542, %v2522
  %v2552 = vsel %vm1472, %v2544, %v2524
  %v2553 = vld [vmem:[%s5] sm:$0xf]
  %v2554 = vld [vmem:[%s5 + $0x4] sm:$0xf]
  %v2555 = vld [vmem:[%s5 + $0x8] sm:$0xf]
  %v2556 = vld [vmem:[%s5 + $0xc] sm:$0xf]
  %v2557 = vld [vmem:[%s6] sm:$0x1]
  %v2559 = vperm.slane %v2557, 0
  %v2565 = vunpack.c.l.b16 %v2553
  %v2566 = vunpack.c.l.b16 %v2554
  %v2567 = vunpack.c.l.b16 %v2555
  %v2568 = vunpack.c.l.b16 %v2556
  %v2569 = vpack.c.b16 %v2566, %v2565
  %v2570 = vpack.c.b16 %v2568, %v2567
  %v2573 = vsel %vm315, %v1474, 0
  %v2575 = vsel %vm315, %v1476, 0
  %v2577 = vsel %vm315, %v1478, 0
  %v2579 = vsel %vm315, %v1480, 0
  %v2581 = vsel %vm315, %v2546, 0
  %v2583 = vsel %vm315, %v2548, 0
  %v2585 = vsel %vm315, %v2550, 0
  %v2587 = vsel %vm315, %v2552, 0
  %2589 = vmatpush.bf16.msra.mxu0 0
  %2590 = vmatpush.bf16.msra.mxu0 0
  %2591 = vmatpush.bf16.msra.mxu0 0
  %2592 = vmatpush.bf16.msra.mxu0 0
  %2593 = vmatpush.bf16.msra.mxu0 0
  %2594 = vmatpush.bf16.msra.mxu0 0
  %2595 = vmatpush.bf16.msra.mxu0 %v2570
  %2596 = vmatpush.bf16.msra.mxu0 %v2569
  %2597 = vmatmul.bf16.gmra.mxu0 %v2573
  %v2598 = vpop.f32.mrf.mxu0
  %v2599 = vadd.f32 %v2559, %v2598
  %v2600 = vpop.f32.mrf.mxu0
  %v2601 = vadd.f32 %v2559, %v2600
  %2602 = vmatmul.bf16.gmra.mxu0 %v2575
  %v2603 = vpop.f32.mrf.mxu0
  %v2604 = vadd.f32 %v2559, %v2603
  %v2605 = vpop.f32.mrf.mxu0
  %v2606 = vadd.f32 %v2559, %v2605
  %2607 = vmatmul.bf16.gmra.mxu0 %v2577
  %v2608 = vpop.f32.mrf.mxu0
  %v2609 = vadd.f32 %v2559, %v2608
  %v2610 = vpop.f32.mrf.mxu0
  %v2611 = vadd.f32 %v2559, %v2610
  %2612 = vmatmul.bf16.gmra.mxu0 %v2579
  %v2613 = vpop.f32.mrf.mxu0
  %v2614 = vadd.f32 %v2559, %v2613
  %v2615 = vpop.f32.mrf.mxu0
  %v2616 = vadd.f32 %v2559, %v2615
  %2617 = vmatmul.bf16.gmra.mxu0 %v2581
  %v2618 = vpop.f32.mrf.mxu0
  %v2619 = vadd.f32 %v2559, %v2618
  %v2620 = vpop.f32.mrf.mxu0
  %v2621 = vadd.f32 %v2559, %v2620
  %2622 = vmatmul.bf16.gmra.mxu0 %v2583
  %v2623 = vpop.f32.mrf.mxu0
  %v2624 = vadd.f32 %v2559, %v2623
  %v2625 = vpop.f32.mrf.mxu0
  %v2626 = vadd.f32 %v2559, %v2625
  %2627 = vmatmul.bf16.gmra.mxu0 %v2585
  %v2628 = vpop.f32.mrf.mxu0
  %v2629 = vadd.f32 %v2559, %v2628
  %v2630 = vpop.f32.mrf.mxu0
  %v2631 = vadd.f32 %v2559, %v2630
  %2632 = vmatmul.bf16.gmra.mxu0 %v2587
  %v2633 = vpop.f32.mrf.mxu0
  %v2634 = vadd.f32 %v2559, %v2633
  %v2635 = vpop.f32.mrf.mxu0
  %v2636 = vadd.f32 %v2559, %v2635
  %2637 = vdwg.mxu0
  %2638 = vst.msk [vmem:[%s7] sm:$0xff] %vm315, %v2599
  %2639 = vst.msk [vmem:[%s7 + $0x8] sm:$0xff] %vm315, %v2601
  %2640 = vst.msk [vmem:[%s7 + $0x10] sm:$0xff] %vm315, %v2604
  %2641 = vst.msk [vmem:[%s7 + $0x18] sm:$0xff] %vm315, %v2606
  %2642 = vst.msk [vmem:[%s7 + $0x20] sm:$0xff] %vm315, %v2609
  %2643 = vst.msk [vmem:[%s7 + $0x28] sm:$0xff] %vm315, %v2611
  %2644 = vst.msk [vmem:[%s7 + $0x30] sm:$0xff] %vm315, %v2614
  %2645 = vst.msk [vmem:[%s7 + $0x38] sm:$0xff] %vm315, %v2616
  %2646 = vst.msk [vmem:[%s7 + $0x40] sm:$0xff] %vm315, %v2619
  %2647 = vst.msk [vmem:[%s7 + $0x48] sm:$0xff] %vm315, %v2621
  %2648 = vst.msk [vmem:[%s7 + $0x50] sm:$0xff] %vm315, %v2624
  %2649 = vst.msk [vmem:[%s7 + $0x58] sm:$0xff] %vm315, %v2626
  %2650 = vst.msk [vmem:[%s7 + $0x60] sm:$0xff] %vm315, %v2629
  %2651 = vst.msk [vmem:[%s7 + $0x68] sm:$0xff] %vm315, %v2631
  %2652 = vst.msk [vmem:[%s7 + $0x70] sm:$0xff] %vm315, %v2634
  %2653 = vst.msk [vmem:[%s7 + $0x78] sm:$0xff] %vm315, %v2636
  // Predicated region
  $region34: #{tpu_custom_call.1} parent=0 // pred_check
    _
  $region35: #{tpu_custom_call.1} parent=0 // pred_check_branch
    %2655 = sbr.rel (0) target = $region37
  $region36: #{tpu_custom_call.1} parent=0 // pred_region
    _
  $region37: #{tpu_custom_call.1} parent=0 // pred_fallthru
    _
  // Predicated region
  $region38: #{tpu_custom_call.1} parent=0 // pred_check
    _
  $region39: #{tpu_custom_call.1} parent=0 // pred_check_branch
    %2657 = sbr.rel (0) target = $region41
  $region40: #{tpu_custom_call.1} parent=0 // pred_region
    _
  $region41: #{tpu_custom_call.1} parent=0 // pred_fallthru
    _

</llo_original>
